<compile_context>
chip_gen: v7x
topology: tpu7x:2x2x1
jax: 0.10.0
libtpu: 0.0.40
codegen_flags: <defaults>
</compile_context>

<pallas_src>
import numpy as np
import jax
import jax.numpy as jnp
from jax import lax
from jax.experimental import pallas as pl
from jax.experimental.pallas import tpu as pltpu

BN_EPS = 1e-5


# ----------------------------------------------------------------------------
# Fused kernel factory (closes over static W, #bottlenecks nb, lane length L).
# Per-step layout: (channels, L) with L = NB*H*W on the lane axis.
# ----------------------------------------------------------------------------
def _make_c2_kernel(W, nb, L):
    # tap order t = kh*3 + kw, offsets dh*W + dw in the flattened image
    taps = [(kh - 1, kw - 1) for kh in range(3) for kw in range(3)]
    # destination p reads source p + off  ->  jnp.roll-style shift (-off) mod L
    shifts = [(-(dh * W + dw)) % L for dh, dw in taps]

    def _silu(v):
        # v * sigmoid(v); exp and approx reciprocal both go to the EUP slot.
        return v * pl.reciprocal(1.0 + jnp.exp(-v), approx=True)

    def _dot(w_bf, v_bf):
        return jnp.dot(w_bf, v_bf, preferred_element_type=jnp.float32)

    def _conv3x3(v, w_ref, b_ref, i, mask):
        # v: (cin, L) f32; w_ref: (nb, cout, 9*cin) bf16; b_ref: (nb, cout, 1).
        # Build the 9 shifted taps with pltpu.roll; masks zero the wrapped
        # border reads.  One fused MXU contraction over K = 9*cin.
        cols = []
        for t in range(9):
            if t == 4:                            # centre tap: no shift, mask==1
                cols.append(v)
            else:
                cols.append(pltpu.roll(v, shift=shifts[t], axis=1) * mask[t])
        stacked = jnp.concatenate(cols, axis=0).astype(jnp.bfloat16)  # (9*cin, L)
        return _dot(w_ref[i], stacked) + b_ref[i]

    def kernel(x_ref, mask_ref, w1a_ref, b1a_ref, w1b_ref, b1b_ref,
               wb1_ref, bb1_ref, wb2_ref, bb2_ref,
               w2a_ref, w2b_ref, b2_ref, out_ref):
        x_bf = x_ref[0].astype(jnp.bfloat16)       # (c1, L)
        mask = mask_ref[...]                       # (9, 1, L) f32

        # cv1 (1x1, BN folded) + SiLU; weights pre-split -> chunk() for free.
        a = _silu(_dot(w1a_ref[...], x_bf) + b1a_ref[...])   # (c, L)
        bpart = _silu(_dot(w1b_ref[...], x_bf) + b1b_ref[...])  # (c, L)

        # n Bottlenecks: a + conv3x3(conv3x3(a))
        cur = a
        for i in range(nb):
            z1 = _silu(_conv3x3(cur, wb1_ref, bb1_ref, i, mask))
            z2 = _silu(_conv3x3(z1, wb2_ref, bb2_ref, i, mask))
            cur = cur + z2

        # cv2 on cat(m, b): weight pre-split -> two dots, no in-kernel concat.
        out = (_dot(w2a_ref[...], cur.astype(jnp.bfloat16))
               + _dot(w2b_ref[...], bpart.astype(jnp.bfloat16))
               + b2_ref[...])
        out_ref[0] = _silu(out)                    # (c2, L) lane-dense store

    return kernel


# ----------------------------------------------------------------------------
# Host-side helpers: tap border masks, batching heuristic, BN folding, wrapper.
# ----------------------------------------------------------------------------
def _build_masks(H, W, NB):
    HW = H * W
    hs = np.arange(HW) // W
    ws = np.arange(HW) % W
    m = np.zeros((9, HW), np.float32)
    t = 0
    for kh in range(3):
        for kw in range(3):
            dh, dw = kh - 1, kw - 1
            m[t] = ((hs + dh >= 0) & (hs + dh < H) &
                    (ws + dw >= 0) & (ws + dw < W)).astype(np.float32)
            t += 1
    m = np.tile(m, (1, NB))                 # masks repeat per folded image
    return jnp.asarray(m[:, None, :])       # (9, 1, NB*HW)


def _pick_images_per_step(N, max_nb=8):
    # Fold several images onto the lane axis per grid step (amortizes per-step
    # overhead, fattens the MXU N dim) while keeping >=2 grid steps when N>=2
    # so both v7x TensorCores get work.
    target = max(1, N // 2)
    nb = 1
    for cand in range(1, min(max_nb, target) + 1):
        if N % cand == 0:
            nb = cand
    return nb


def c2_forward(x, p):
    N, c1, H, W = x.shape
    HW = H * W
    nb, c = p['w_b1'].shape[0], p['w_b1'].shape[1]
    c2_out = p['w_cv2'].shape[0]

    NB = _pick_images_per_step(N)
    G = N // NB
    L = NB * HW

    def fold1x1(w, bnp):                                     # w: (cout, cin, 1, 1)
        s = bnp['gamma'] / jnp.sqrt(bnp['var'] + BN_EPS)
        return w[:, :, 0, 0] * s[:, None], (bnp['beta'] - s * bnp['mean'])[:, None]

    def fold3x3(w, bnp):                                     # w: (nb, cout, cin, 3, 3)
        nbl, cout, cin = w.shape[0], w.shape[1], w.shape[2]
        s = bnp['gamma'] / jnp.sqrt(bnp['var'] + BN_EPS)     # (nb, cout)
        wf = w * s[:, :, None, None, None]
        wf = jnp.transpose(wf, (0, 1, 3, 4, 2))              # (nb, cout, 3, 3, cin)
        wf = wf.reshape(nbl, cout, 9 * cin)                  # col = (kh*3+kw)*cin + ci
        bf = (bnp['beta'] - s * bnp['mean'])[:, :, None]     # (nb, cout, 1)
        return wf.astype(jnp.bfloat16), bf

    w1f, b1f = fold1x1(p['w_cv1'], p['bn_cv1'])
    w2f, b2f = fold1x1(p['w_cv2'], p['bn_cv2'])
    # Pre-split cv1 rows (chunk) and cv2 cols (cat) so the kernel never slices
    # along non-tile-aligned channel offsets.  Matmul weights cast to bf16.
    w1a, w1b = w1f[:c].astype(jnp.bfloat16), w1f[c:].astype(jnp.bfloat16)
    b1a, b1b = b1f[:c], b1f[c:]
    w2a, w2b = w2f[:, :c].astype(jnp.bfloat16), w2f[:, c:].astype(jnp.bfloat16)
    wb1, bb1 = fold3x3(p['w_b1'], p['bn_b1'])
    wb2, bb2 = fold3x3(p['w_b2'], p['bn_b2'])
    masks = _build_masks(H, W, NB)

    # NCHW -> (G, c1, NB*HW): NB images folded onto the lane axis (tiny host
    # reshape/transpose; the kernel itself stays lane-dense and transpose-free).
    x_g = x.reshape(G, NB, c1, HW).transpose(0, 2, 1, 3).reshape(G, c1, L)

    kernel = _make_c2_kernel(W, nb, L)

    def _full(a):
        z = (0,) * a.ndim
        return pl.BlockSpec(a.shape, lambda g, _z=z: _z)

    out = pl.pallas_call(
        kernel,
        grid=(G,),
        in_specs=[pl.BlockSpec((1, c1, L), lambda g: (g, 0, 0)),
                  _full(masks),
                  _full(w1a), _full(b1a), _full(w1b), _full(b1b),
                  _full(wb1), _full(bb1), _full(wb2), _full(bb2),
                  _full(w2a), _full(w2b), _full(b2f)],
        out_specs=pl.BlockSpec((1, c2_out, L), lambda g: (g, 0, 0)),
        out_shape=jax.ShapeDtypeStruct((G, c2_out, L), jnp.float32),
        compiler_params=pltpu.CompilerParams(
            dimension_semantics=("parallel",),
            vmem_limit_bytes=64 * 1024 * 1024),
    )(x_g, masks, w1a, b1a, w1b, b1b, wb1, bb1, wb2, bb2, w2a, w2b, b2f)

    return (out.reshape(G, c2_out, NB, HW)
               .transpose(0, 2, 1, 3)
               .reshape(N, c2_out, H, W))


# ----------------------------------------------------------------------------
# Deterministic synthetic parameters (Conv2d weights + BatchNorm running stats).
# ----------------------------------------------------------------------------
def init_params(key, c1, c2, n=1, e=0.5):
    c = int(c2 * e)
    ks = jax.random.split(key, 24)
    it = iter(range(24))

    def nrm(shape, scale=0.4):
        return scale * jax.random.normal(ks[next(it)], shape, jnp.float32)

    def bn(shape):
        return {'gamma': 1.0 + nrm(shape, 0.1),
                'beta': nrm(shape, 0.1),
                'mean': nrm(shape, 0.1),
                'var': 1.0 + jnp.abs(nrm(shape, 0.2))}

    return {
        'w_cv1': nrm((2 * c, c1, 1, 1)), 'bn_cv1': bn((2 * c,)),
        'w_b1':  nrm((n, c, c, 3, 3)),   'bn_b1':  bn((n, c)),
        'w_b2':  nrm((n, c, c, 3, 3)),   'bn_b2':  bn((n, c)),
        'w_cv2': nrm((c2, 2 * c, 1, 1)), 'bn_cv2': bn((c2,)),
    }


# ----------------------------------------------------------------------------
# Pure-JAX f32 reference mirroring the PyTorch forward (eval-mode BN, SiLU).
# ----------------------------------------------------------------------------
def reference_forward(x, p):
    def conv_bn_silu(v, w, bnp, pad):
        y = lax.conv_general_dilated(v, w, (1, 1), pad,
                                     dimension_numbers=('NCHW', 'OIHW', 'NCHW'))
        g, b, m, var = bnp['gamma'], bnp['beta'], bnp['mean'], bnp['var']
        y = (y - m[None, :, None, None]) / jnp.sqrt(var[None, :, None, None] + BN_EPS)
        y = y * g[None, :, None, None] + b[None, :, None, None]
        return jax.nn.silu(y)

    nb, c = p['w_b1'].shape[0], p['w_b1'].shape[1]
    y = conv_bn_silu(x, p['w_cv1'], p['bn_cv1'], [(0, 0), (0, 0)])
    a, b2 = y[:, :c], y[:, c:]
    cur = a
    for i in range(nb):
        bn1 = {k: v[i] for k, v in p['bn_b1'].items()}
        bn2 = {k: v[i] for k, v in p['bn_b2'].items()}
        z1 = conv_bn_silu(cur, p['w_b1'][i], bn1, [(1, 1), (1, 1)])
        z2 = conv_bn_silu(z1, p['w_b2'][i], bn2, [(1, 1), (1, 1)])
        cur = cur + z2
    cat = jnp.concatenate([cur, b2], axis=1)
    return conv_bn_silu(cat, p['w_cv2'], p['bn_cv2'], [(0, 0), (0, 0)])


if __name__ == "__main__":
    key = jax.random.PRNGKey(0)
    kx, kp = jax.random.split(key)
    N, c1, c2_out, H, W = 2, 4, 4, 16, 16          # C2(c1=4, c2=4, n=1, e=0.5) -> c=2
    x = jax.random.normal(kx, (N, c1, H, W), jnp.float32)
    params = init_params(kp, c1, c2_out, n=1, e=0.5)

    y = jax.block_until_ready(jax.jit(c2_forward)(x, params))
    y_ref = jax.block_until_ready(jax.jit(reference_forward)(x, params))

    # Kernel uses bf16 MXU operands (f32 accumulation) + approx reciprocal in
    # SiLU, so compare against the f32 reference at a bf16-appropriate tolerance.
    err = float(jnp.max(jnp.abs(y - y_ref)))
    assert y.shape == (N, c2_out, H, W) and err < 6e-2, f"max abs err {err}"
    print("KERNEL_OK")
</pallas_src>

<mosaic_0001>
module attributes {stable_mosaic.version = 11 : i64} {
  func.func @kernel(%arg0: i32, %arg1: memref<1x4x256xf32, #tpu.memory_space<vmem>>, %arg2: memref<9x1x256xf32, #tpu.memory_space<vmem>>, %arg3: memref<2x4xbf16, #tpu.memory_space<vmem>>, %arg4: memref<2x1xf32, #tpu.memory_space<vmem>>, %arg5: memref<2x4xbf16, #tpu.memory_space<vmem>>, %arg6: memref<2x1xf32, #tpu.memory_space<vmem>>, %arg7: memref<1x2x18xbf16, #tpu.memory_space<vmem>>, %arg8: memref<1x2x1xf32, #tpu.memory_space<vmem>>, %arg9: memref<1x2x18xbf16, #tpu.memory_space<vmem>>, %arg10: memref<1x2x1xf32, #tpu.memory_space<vmem>>, %arg11: memref<4x2xbf16, #tpu.memory_space<vmem>>, %arg12: memref<4x2xbf16, #tpu.memory_space<vmem>>, %arg13: memref<4x1xf32, #tpu.memory_space<vmem>>, %arg14: memref<1x4x256xf32, #tpu.memory_space<vmem>>) attributes {dimension_semantics = [#tpu.dimension_semantics<parallel>], iteration_bounds = array<i64: 2>, scalar_prefetch = 0 : i64, scratch_operands = 0 : i64, tpu.core_type = #tpu.core_type<tc>, window_params = [{transform_indices = @transform_0, window_bounds = array<i64: 1, 4, 256>}, {pipeline_mode = #tpu.pipeline_mode<synchronous>, transform_indices = @transform_1, window_bounds = array<i64: 9, 1, 256>}, {pipeline_mode = #tpu.pipeline_mode<synchronous>, transform_indices = @transform_2, window_bounds = array<i64: 2, 4>}, {pipeline_mode = #tpu.pipeline_mode<synchronous>, transform_indices = @transform_3, window_bounds = array<i64: 2, 1>}, {pipeline_mode = #tpu.pipeline_mode<synchronous>, transform_indices = @transform_4, window_bounds = array<i64: 2, 4>}, {pipeline_mode = #tpu.pipeline_mode<synchronous>, transform_indices = @transform_5, window_bounds = array<i64: 2, 1>}, {pipeline_mode = #tpu.pipeline_mode<synchronous>, transform_indices = @transform_6, window_bounds = array<i64: 1, 2, 18>}, {pipeline_mode = #tpu.pipeline_mode<synchronous>, transform_indices = @transform_7, window_bounds = array<i64: 1, 2, 1>}, {pipeline_mode = #tpu.pipeline_mode<synchronous>, transform_indices = @transform_8, window_bounds = array<i64: 1, 2, 18>}, {pipeline_mode = #tpu.pipeline_mode<synchronous>, transform_indices = @transform_9, window_bounds = array<i64: 1, 2, 1>}, {pipeline_mode = #tpu.pipeline_mode<synchronous>, transform_indices = @transform_10, window_bounds = array<i64: 4, 2>}, {pipeline_mode = #tpu.pipeline_mode<synchronous>, transform_indices = @transform_11, window_bounds = array<i64: 4, 2>}, {pipeline_mode = #tpu.pipeline_mode<synchronous>, transform_indices = @transform_12, window_bounds = array<i64: 4, 1>}, {transform_indices = @transform_13, window_bounds = array<i64: 1, 4, 256>}]} {
    %c0 = arith.constant 0 : index
    %c0_0 = arith.constant 0 : index
    %c0_1 = arith.constant 0 : index
    %0 = vector.load %arg1[%c0, %c0_0, %c0_1] : memref<1x4x256xf32, #tpu.memory_space<vmem>>, vector<1x4x256xf32>
    %1 = vector.shape_cast %0 : vector<1x4x256xf32> to vector<4x256xf32>
    %2 = arith.truncf %1 : vector<4x256xf32> to vector<4x256xbf16>
    %c0_2 = arith.constant 0 : index
    %c0_3 = arith.constant 0 : index
    %c0_4 = arith.constant 0 : index
    %3 = vector.load %arg2[%c0_2, %c0_3, %c0_4] : memref<9x1x256xf32, #tpu.memory_space<vmem>>, vector<9x1x256xf32>
    %c0_5 = arith.constant 0 : index
    %c0_6 = arith.constant 0 : index
    %4 = vector.load %arg3[%c0_5, %c0_6] : memref<2x4xbf16, #tpu.memory_space<vmem>>, vector<2x4xbf16>
    %cst = arith.constant dense<0.000000e+00> : vector<2x256xf32>
    %5 = tpu.matmul %4, %2, %cst {dimension_numbers = #tpu.dot_dimension_numbers<[1], [0], [0], [1], [0, 0, 1, 1], [], []>} : vector<2x4xbf16>, vector<4x256xbf16>, vector<2x256xf32> -> vector<2x256xf32>
    %c0_7 = arith.constant 0 : index
    %c0_8 = arith.constant 0 : index
    %6 = vector.load %arg4[%c0_7, %c0_8] : memref<2x1xf32, #tpu.memory_space<vmem>>, vector<2x1xf32>
    %7 = vector.broadcast %6 : vector<2x1xf32> to vector<2x256xf32>
    %8 = arith.addf %5, %7 : vector<2x256xf32>
    %cst_9 = arith.constant 0.000000e+00 : f32
    %9 = vector.broadcast %cst_9 : f32 to vector<2x256xf32>
    %10 = arith.subf %9, %8 : vector<2x256xf32>
    %11 = math.exp %10 : vector<2x256xf32>
    %cst_10 = arith.constant 1.000000e+00 : f32
    %12 = vector.broadcast %cst_10 : f32 to vector<2x256xf32>
    %13 = arith.addf %12, %11 : vector<2x256xf32>
    %14 = tpu.reciprocal %13 {approx = true} : vector<2x256xf32> -> vector<2x256xf32>
    %15 = arith.mulf %8, %14 : vector<2x256xf32>
    %c0_11 = arith.constant 0 : index
    %c0_12 = arith.constant 0 : index
    %16 = vector.load %arg5[%c0_11, %c0_12] : memref<2x4xbf16, #tpu.memory_space<vmem>>, vector<2x4xbf16>
    %cst_13 = arith.constant dense<0.000000e+00> : vector<2x256xf32>
    %17 = tpu.matmul %16, %2, %cst_13 {dimension_numbers = #tpu.dot_dimension_numbers<[1], [0], [0], [1], [0, 0, 1, 1], [], []>} : vector<2x4xbf16>, vector<4x256xbf16>, vector<2x256xf32> -> vector<2x256xf32>
    %c0_14 = arith.constant 0 : index
    %c0_15 = arith.constant 0 : index
    %18 = vector.load %arg6[%c0_14, %c0_15] : memref<2x1xf32, #tpu.memory_space<vmem>>, vector<2x1xf32>
    %19 = vector.broadcast %18 : vector<2x1xf32> to vector<2x256xf32>
    %20 = arith.addf %17, %19 : vector<2x256xf32>
    %cst_16 = arith.constant 0.000000e+00 : f32
    %21 = vector.broadcast %cst_16 : f32 to vector<2x256xf32>
    %22 = arith.subf %21, %20 : vector<2x256xf32>
    %23 = math.exp %22 : vector<2x256xf32>
    %cst_17 = arith.constant 1.000000e+00 : f32
    %24 = vector.broadcast %cst_17 : f32 to vector<2x256xf32>
    %25 = arith.addf %24, %23 : vector<2x256xf32>
    %26 = tpu.reciprocal %25 {approx = true} : vector<2x256xf32> -> vector<2x256xf32>
    %27 = arith.mulf %20, %26 : vector<2x256xf32>
    %c17_i32 = arith.constant 17 : i32
    %28 = tpu.dynamic_rotate %15 by %c17_i32 dim 1 : vector<2x256xf32>, i32 -> vector<2x256xf32>
    %29 = vector.extract_strided_slice %3 {offsets = [0, 0, 0], sizes = [1, 1, 256], strides = [1, 1, 1]} : vector<9x1x256xf32> to vector<1x1x256xf32>
    %30 = vector.shape_cast %29 : vector<1x1x256xf32> to vector<1x256xf32>
    %31 = vector.broadcast %30 : vector<1x256xf32> to vector<2x256xf32>
    %32 = arith.mulf %28, %31 : vector<2x256xf32>
    %c16_i32 = arith.constant 16 : i32
    %33 = tpu.dynamic_rotate %15 by %c16_i32 dim 1 : vector<2x256xf32>, i32 -> vector<2x256xf32>
    %34 = vector.extract_strided_slice %3 {offsets = [1, 0, 0], sizes = [1, 1, 256], strides = [1, 1, 1]} : vector<9x1x256xf32> to vector<1x1x256xf32>
    %35 = vector.shape_cast %34 : vector<1x1x256xf32> to vector<1x256xf32>
    %36 = vector.broadcast %35 : vector<1x256xf32> to vector<2x256xf32>
    %37 = arith.mulf %33, %36 : vector<2x256xf32>
    %c15_i32 = arith.constant 15 : i32
    %38 = tpu.dynamic_rotate %15 by %c15_i32 dim 1 : vector<2x256xf32>, i32 -> vector<2x256xf32>
    %39 = vector.extract_strided_slice %3 {offsets = [2, 0, 0], sizes = [1, 1, 256], strides = [1, 1, 1]} : vector<9x1x256xf32> to vector<1x1x256xf32>
    %40 = vector.shape_cast %39 : vector<1x1x256xf32> to vector<1x256xf32>
    %41 = vector.broadcast %40 : vector<1x256xf32> to vector<2x256xf32>
    %42 = arith.mulf %38, %41 : vector<2x256xf32>
    %c1_i32 = arith.constant 1 : i32
    %43 = tpu.dynamic_rotate %15 by %c1_i32 dim 1 : vector<2x256xf32>, i32 -> vector<2x256xf32>
    %44 = vector.extract_strided_slice %3 {offsets = [3, 0, 0], sizes = [1, 1, 256], strides = [1, 1, 1]} : vector<9x1x256xf32> to vector<1x1x256xf32>
    %45 = vector.shape_cast %44 : vector<1x1x256xf32> to vector<1x256xf32>
    %46 = vector.broadcast %45 : vector<1x256xf32> to vector<2x256xf32>
    %47 = arith.mulf %43, %46 : vector<2x256xf32>
    %c255_i32 = arith.constant 255 : i32
    %48 = tpu.dynamic_rotate %15 by %c255_i32 dim 1 : vector<2x256xf32>, i32 -> vector<2x256xf32>
    %49 = vector.extract_strided_slice %3 {offsets = [5, 0, 0], sizes = [1, 1, 256], strides = [1, 1, 1]} : vector<9x1x256xf32> to vector<1x1x256xf32>
    %50 = vector.shape_cast %49 : vector<1x1x256xf32> to vector<1x256xf32>
    %51 = vector.broadcast %50 : vector<1x256xf32> to vector<2x256xf32>
    %52 = arith.mulf %48, %51 : vector<2x256xf32>
    %c241_i32 = arith.constant 241 : i32
    %53 = tpu.dynamic_rotate %15 by %c241_i32 dim 1 : vector<2x256xf32>, i32 -> vector<2x256xf32>
    %54 = vector.extract_strided_slice %3 {offsets = [6, 0, 0], sizes = [1, 1, 256], strides = [1, 1, 1]} : vector<9x1x256xf32> to vector<1x1x256xf32>
    %55 = vector.shape_cast %54 : vector<1x1x256xf32> to vector<1x256xf32>
    %56 = vector.broadcast %55 : vector<1x256xf32> to vector<2x256xf32>
    %57 = arith.mulf %53, %56 : vector<2x256xf32>
    %c240_i32 = arith.constant 240 : i32
    %58 = tpu.dynamic_rotate %15 by %c240_i32 dim 1 : vector<2x256xf32>, i32 -> vector<2x256xf32>
    %59 = vector.extract_strided_slice %3 {offsets = [7, 0, 0], sizes = [1, 1, 256], strides = [1, 1, 1]} : vector<9x1x256xf32> to vector<1x1x256xf32>
    %60 = vector.shape_cast %59 : vector<1x1x256xf32> to vector<1x256xf32>
    %61 = vector.broadcast %60 : vector<1x256xf32> to vector<2x256xf32>
    %62 = arith.mulf %58, %61 : vector<2x256xf32>
    %c239_i32 = arith.constant 239 : i32
    %63 = tpu.dynamic_rotate %15 by %c239_i32 dim 1 : vector<2x256xf32>, i32 -> vector<2x256xf32>
    %64 = vector.extract_strided_slice %3 {offsets = [8, 0, 0], sizes = [1, 1, 256], strides = [1, 1, 1]} : vector<9x1x256xf32> to vector<1x1x256xf32>
    %65 = vector.shape_cast %64 : vector<1x1x256xf32> to vector<1x256xf32>
    %66 = vector.broadcast %65 : vector<1x256xf32> to vector<2x256xf32>
    %67 = arith.mulf %63, %66 : vector<2x256xf32>
    %68 = tpu.concatenate %32, %37, %42, %47, %15, %52, %57, %62, %67 in 0 : vector<2x256xf32>, vector<2x256xf32>, vector<2x256xf32>, vector<2x256xf32>, vector<2x256xf32>, vector<2x256xf32>, vector<2x256xf32>, vector<2x256xf32>, vector<2x256xf32> -> vector<18x256xf32>
    %69 = arith.truncf %68 : vector<18x256xf32> to vector<18x256xbf16>
    %c0_18 = arith.constant 0 : index
    %c0_19 = arith.constant 0 : index
    %c0_20 = arith.constant 0 : index
    %70 = vector.load %arg7[%c0_18, %c0_19, %c0_20] : memref<1x2x18xbf16, #tpu.memory_space<vmem>>, vector<1x2x18xbf16>
    %71 = vector.shape_cast %70 : vector<1x2x18xbf16> to vector<2x18xbf16>
    %cst_21 = arith.constant dense<0.000000e+00> : vector<2x256xf32>
    %72 = tpu.matmul %71, %69, %cst_21 {dimension_numbers = #tpu.dot_dimension_numbers<[1], [0], [0], [1], [0, 0, 1, 1], [], []>} : vector<2x18xbf16>, vector<18x256xbf16>, vector<2x256xf32> -> vector<2x256xf32>
    %c0_22 = arith.constant 0 : index
    %c0_23 = arith.constant 0 : index
    %c0_24 = arith.constant 0 : index
    %73 = vector.load %arg8[%c0_22, %c0_23, %c0_24] : memref<1x2x1xf32, #tpu.memory_space<vmem>>, vector<1x2x1xf32>
    %74 = vector.shape_cast %73 : vector<1x2x1xf32> to vector<2x1xf32>
    %75 = vector.broadcast %74 : vector<2x1xf32> to vector<2x256xf32>
    %76 = arith.addf %72, %75 : vector<2x256xf32>
    %cst_25 = arith.constant 0.000000e+00 : f32
    %77 = vector.broadcast %cst_25 : f32 to vector<2x256xf32>
    %78 = arith.subf %77, %76 : vector<2x256xf32>
    %79 = math.exp %78 : vector<2x256xf32>
    %cst_26 = arith.constant 1.000000e+00 : f32
    %80 = vector.broadcast %cst_26 : f32 to vector<2x256xf32>
    %81 = arith.addf %80, %79 : vector<2x256xf32>
    %82 = tpu.reciprocal %81 {approx = true} : vector<2x256xf32> -> vector<2x256xf32>
    %83 = arith.mulf %76, %82 : vector<2x256xf32>
    %c17_i32_27 = arith.constant 17 : i32
    %84 = tpu.dynamic_rotate %83 by %c17_i32_27 dim 1 : vector<2x256xf32>, i32 -> vector<2x256xf32>
    %85 = vector.extract_strided_slice %3 {offsets = [0, 0, 0], sizes = [1, 1, 256], strides = [1, 1, 1]} : vector<9x1x256xf32> to vector<1x1x256xf32>
    %86 = vector.shape_cast %85 : vector<1x1x256xf32> to vector<1x256xf32>
    %87 = vector.broadcast %86 : vector<1x256xf32> to vector<2x256xf32>
    %88 = arith.mulf %84, %87 : vector<2x256xf32>
    %c16_i32_28 = arith.constant 16 : i32
    %89 = tpu.dynamic_rotate %83 by %c16_i32_28 dim 1 : vector<2x256xf32>, i32 -> vector<2x256xf32>
    %90 = vector.extract_strided_slice %3 {offsets = [1, 0, 0], sizes = [1, 1, 256], strides = [1, 1, 1]} : vector<9x1x256xf32> to vector<1x1x256xf32>
    %91 = vector.shape_cast %90 : vector<1x1x256xf32> to vector<1x256xf32>
    %92 = vector.broadcast %91 : vector<1x256xf32> to vector<2x256xf32>
    %93 = arith.mulf %89, %92 : vector<2x256xf32>
    %c15_i32_29 = arith.constant 15 : i32
    %94 = tpu.dynamic_rotate %83 by %c15_i32_29 dim 1 : vector<2x256xf32>, i32 -> vector<2x256xf32>
    %95 = vector.extract_strided_slice %3 {offsets = [2, 0, 0], sizes = [1, 1, 256], strides = [1, 1, 1]} : vector<9x1x256xf32> to vector<1x1x256xf32>
    %96 = vector.shape_cast %95 : vector<1x1x256xf32> to vector<1x256xf32>
    %97 = vector.broadcast %96 : vector<1x256xf32> to vector<2x256xf32>
    %98 = arith.mulf %94, %97 : vector<2x256xf32>
    %c1_i32_30 = arith.constant 1 : i32
    %99 = tpu.dynamic_rotate %83 by %c1_i32_30 dim 1 : vector<2x256xf32>, i32 -> vector<2x256xf32>
    %100 = vector.extract_strided_slice %3 {offsets = [3, 0, 0], sizes = [1, 1, 256], strides = [1, 1, 1]} : vector<9x1x256xf32> to vector<1x1x256xf32>
    %101 = vector.shape_cast %100 : vector<1x1x256xf32> to vector<1x256xf32>
    %102 = vector.broadcast %101 : vector<1x256xf32> to vector<2x256xf32>
    %103 = arith.mulf %99, %102 : vector<2x256xf32>
    %c255_i32_31 = arith.constant 255 : i32
    %104 = tpu.dynamic_rotate %83 by %c255_i32_31 dim 1 : vector<2x256xf32>, i32 -> vector<2x256xf32>
    %105 = vector.extract_strided_slice %3 {offsets = [5, 0, 0], sizes = [1, 1, 256], strides = [1, 1, 1]} : vector<9x1x256xf32> to vector<1x1x256xf32>
    %106 = vector.shape_cast %105 : vector<1x1x256xf32> to vector<1x256xf32>
    %107 = vector.broadcast %106 : vector<1x256xf32> to vector<2x256xf32>
    %108 = arith.mulf %104, %107 : vector<2x256xf32>
    %c241_i32_32 = arith.constant 241 : i32
    %109 = tpu.dynamic_rotate %83 by %c241_i32_32 dim 1 : vector<2x256xf32>, i32 -> vector<2x256xf32>
    %110 = vector.extract_strided_slice %3 {offsets = [6, 0, 0], sizes = [1, 1, 256], strides = [1, 1, 1]} : vector<9x1x256xf32> to vector<1x1x256xf32>
    %111 = vector.shape_cast %110 : vector<1x1x256xf32> to vector<1x256xf32>
    %112 = vector.broadcast %111 : vector<1x256xf32> to vector<2x256xf32>
    %113 = arith.mulf %109, %112 : vector<2x256xf32>
    %c240_i32_33 = arith.constant 240 : i32
    %114 = tpu.dynamic_rotate %83 by %c240_i32_33 dim 1 : vector<2x256xf32>, i32 -> vector<2x256xf32>
    %115 = vector.extract_strided_slice %3 {offsets = [7, 0, 0], sizes = [1, 1, 256], strides = [1, 1, 1]} : vector<9x1x256xf32> to vector<1x1x256xf32>
    %116 = vector.shape_cast %115 : vector<1x1x256xf32> to vector<1x256xf32>
    %117 = vector.broadcast %116 : vector<1x256xf32> to vector<2x256xf32>
    %118 = arith.mulf %114, %117 : vector<2x256xf32>
    %c239_i32_34 = arith.constant 239 : i32
    %119 = tpu.dynamic_rotate %83 by %c239_i32_34 dim 1 : vector<2x256xf32>, i32 -> vector<2x256xf32>
    %120 = vector.extract_strided_slice %3 {offsets = [8, 0, 0], sizes = [1, 1, 256], strides = [1, 1, 1]} : vector<9x1x256xf32> to vector<1x1x256xf32>
    %121 = vector.shape_cast %120 : vector<1x1x256xf32> to vector<1x256xf32>
    %122 = vector.broadcast %121 : vector<1x256xf32> to vector<2x256xf32>
    %123 = arith.mulf %119, %122 : vector<2x256xf32>
    %124 = tpu.concatenate %88, %93, %98, %103, %83, %108, %113, %118, %123 in 0 : vector<2x256xf32>, vector<2x256xf32>, vector<2x256xf32>, vector<2x256xf32>, vector<2x256xf32>, vector<2x256xf32>, vector<2x256xf32>, vector<2x256xf32>, vector<2x256xf32> -> vector<18x256xf32>
    %125 = arith.truncf %124 : vector<18x256xf32> to vector<18x256xbf16>
    %c0_35 = arith.constant 0 : index
    %c0_36 = arith.constant 0 : index
    %c0_37 = arith.constant 0 : index
    %126 = vector.load %arg9[%c0_35, %c0_36, %c0_37] : memref<1x2x18xbf16, #tpu.memory_space<vmem>>, vector<1x2x18xbf16>
    %127 = vector.shape_cast %126 : vector<1x2x18xbf16> to vector<2x18xbf16>
    %cst_38 = arith.constant dense<0.000000e+00> : vector<2x256xf32>
    %128 = tpu.matmul %127, %125, %cst_38 {dimension_numbers = #tpu.dot_dimension_numbers<[1], [0], [0], [1], [0, 0, 1, 1], [], []>} : vector<2x18xbf16>, vector<18x256xbf16>, vector<2x256xf32> -> vector<2x256xf32>
    %c0_39 = arith.constant 0 : index
    %c0_40 = arith.constant 0 : index
    %c0_41 = arith.constant 0 : index
    %129 = vector.load %arg10[%c0_39, %c0_40, %c0_41] : memref<1x2x1xf32, #tpu.memory_space<vmem>>, vector<1x2x1xf32>
    %130 = vector.shape_cast %129 : vector<1x2x1xf32> to vector<2x1xf32>
    %131 = vector.broadcast %130 : vector<2x1xf32> to vector<2x256xf32>
    %132 = arith.addf %128, %131 : vector<2x256xf32>
    %cst_42 = arith.constant 0.000000e+00 : f32
    %133 = vector.broadcast %cst_42 : f32 to vector<2x256xf32>
    %134 = arith.subf %133, %132 : vector<2x256xf32>
    %135 = math.exp %134 : vector<2x256xf32>
    %cst_43 = arith.constant 1.000000e+00 : f32
    %136 = vector.broadcast %cst_43 : f32 to vector<2x256xf32>
    %137 = arith.addf %136, %135 : vector<2x256xf32>
    %138 = tpu.reciprocal %137 {approx = true} : vector<2x256xf32> -> vector<2x256xf32>
    %139 = arith.mulf %132, %138 : vector<2x256xf32>
    %140 = arith.addf %15, %139 : vector<2x256xf32>
    %c0_44 = arith.constant 0 : index
    %c0_45 = arith.constant 0 : index
    %141 = vector.load %arg11[%c0_44, %c0_45] : memref<4x2xbf16, #tpu.memory_space<vmem>>, vector<4x2xbf16>
    %142 = arith.truncf %140 : vector<2x256xf32> to vector<2x256xbf16>
    %cst_46 = arith.constant dense<0.000000e+00> : vector<4x256xf32>
    %143 = tpu.matmul %141, %142, %cst_46 {dimension_numbers = #tpu.dot_dimension_numbers<[1], [0], [0], [1], [0, 0, 1, 1], [], []>} : vector<4x2xbf16>, vector<2x256xbf16>, vector<4x256xf32> -> vector<4x256xf32>
    %c0_47 = arith.constant 0 : index
    %c0_48 = arith.constant 0 : index
    %144 = vector.load %arg12[%c0_47, %c0_48] : memref<4x2xbf16, #tpu.memory_space<vmem>>, vector<4x2xbf16>
    %145 = arith.truncf %27 : vector<2x256xf32> to vector<2x256xbf16>
    %cst_49 = arith.constant dense<0.000000e+00> : vector<4x256xf32>
    %146 = tpu.matmul %144, %145, %cst_49 {dimension_numbers = #tpu.dot_dimension_numbers<[1], [0], [0], [1], [0, 0, 1, 1], [], []>} : vector<4x2xbf16>, vector<2x256xbf16>, vector<4x256xf32> -> vector<4x256xf32>
    %147 = arith.addf %143, %146 : vector<4x256xf32>
    %c0_50 = arith.constant 0 : index
    %c0_51 = arith.constant 0 : index
    %148 = vector.load %arg13[%c0_50, %c0_51] : memref<4x1xf32, #tpu.memory_space<vmem>>, vector<4x1xf32>
    %149 = vector.broadcast %148 : vector<4x1xf32> to vector<4x256xf32>
    %150 = arith.addf %147, %149 : vector<4x256xf32>
    %cst_52 = arith.constant 0.000000e+00 : f32
    %151 = vector.broadcast %cst_52 : f32 to vector<4x256xf32>
    %152 = arith.subf %151, %150 : vector<4x256xf32>
    %153 = math.exp %152 : vector<4x256xf32>
    %cst_53 = arith.constant 1.000000e+00 : f32
    %154 = vector.broadcast %cst_53 : f32 to vector<4x256xf32>
    %155 = arith.addf %154, %153 : vector<4x256xf32>
    %156 = tpu.reciprocal %155 {approx = true} : vector<4x256xf32> -> vector<4x256xf32>
    %157 = arith.mulf %150, %156 : vector<4x256xf32>
    %c0_54 = arith.constant 0 : index
    %c0_55 = arith.constant 0 : index
    %c0_56 = arith.constant 0 : index
    %158 = vector.load %arg14[%c0_54, %c0_55, %c0_56] : memref<1x4x256xf32, #tpu.memory_space<vmem>>, vector<1x4x256xf32>
    %159 = vector.shape_cast %158 : vector<1x4x256xf32> to vector<4x256xf32>
    %160 = vector.shape_cast %157 : vector<4x256xf32> to vector<1x4x256xf32>
    tpu.vector_store %arg14[%c0_54, %c0_55, %c0_56], %160 {strides = array<i32>} : memref<1x4x256xf32, #tpu.memory_space<vmem>>, vector<1x4x256xf32>,
    return
  }
  func.func @transform_0(%arg0: i32) -> (i32, i32, i32) {
    %c0_i32 = arith.constant 0 : i32
    %c0_i32_0 = arith.constant 0 : i32
    %c0_i32_1 = arith.constant 0 : i32
    return %arg0, %c0_i32, %c0_i32_0 : i32, i32, i32
  }
  func.func @transform_1(%arg0: i32) -> (i32, i32, i32) {
    %c0_i32 = arith.constant 0 : i32
    %c0_i32_0 = arith.constant 0 : i32
    %c0_i32_1 = arith.constant 0 : i32
    %c0_i32_2 = arith.constant 0 : i32
    return %c0_i32, %c0_i32_0, %c0_i32_1 : i32, i32, i32
  }
  func.func @transform_2(%arg0: i32) -> (i32, i32) {
    %c0_i32 = arith.constant 0 : i32
    %c0_i32_0 = arith.constant 0 : i32
    %c0_i32_1 = arith.constant 0 : i32
    return %c0_i32, %c0_i32_0 : i32, i32
  }
  func.func @transform_3(%arg0: i32) -> (i32, i32) {
    %c0_i32 = arith.constant 0 : i32
    %c0_i32_0 = arith.constant 0 : i32
    %c0_i32_1 = arith.constant 0 : i32
    return %c0_i32, %c0_i32_0 : i32, i32
  }
  func.func @transform_4(%arg0: i32) -> (i32, i32) {
    %c0_i32 = arith.constant 0 : i32
    %c0_i32_0 = arith.constant 0 : i32
    %c0_i32_1 = arith.constant 0 : i32
    return %c0_i32, %c0_i32_0 : i32, i32
  }
  func.func @transform_5(%arg0: i32) -> (i32, i32) {
    %c0_i32 = arith.constant 0 : i32
    %c0_i32_0 = arith.constant 0 : i32
    %c0_i32_1 = arith.constant 0 : i32
    return %c0_i32, %c0_i32_0 : i32, i32
  }
  func.func @transform_6(%arg0: i32) -> (i32, i32, i32) {
    %c0_i32 = arith.constant 0 : i32
    %c0_i32_0 = arith.constant 0 : i32
    %c0_i32_1 = arith.constant 0 : i32
    %c0_i32_2 = arith.constant 0 : i32
    return %c0_i32, %c0_i32_0, %c0_i32_1 : i32, i32, i32
  }
  func.func @transform_7(%arg0: i32) -> (i32, i32, i32) {
    %c0_i32 = arith.constant 0 : i32
    %c0_i32_0 = arith.constant 0 : i32
    %c0_i32_1 = arith.constant 0 : i32
    %c0_i32_2 = arith.constant 0 : i32
    return %c0_i32, %c0_i32_0, %c0_i32_1 : i32, i32, i32
  }
  func.func @transform_8(%arg0: i32) -> (i32, i32, i32) {
    %c0_i32 = arith.constant 0 : i32
    %c0_i32_0 = arith.constant 0 : i32
    %c0_i32_1 = arith.constant 0 : i32
    %c0_i32_2 = arith.constant 0 : i32
    return %c0_i32, %c0_i32_0, %c0_i32_1 : i32, i32, i32
  }
  func.func @transform_9(%arg0: i32) -> (i32, i32, i32) {
    %c0_i32 = arith.constant 0 : i32
    %c0_i32_0 = arith.constant 0 : i32
    %c0_i32_1 = arith.constant 0 : i32
    %c0_i32_2 = arith.constant 0 : i32
    return %c0_i32, %c0_i32_0, %c0_i32_1 : i32, i32, i32
  }
  func.func @transform_10(%arg0: i32) -> (i32, i32) {
    %c0_i32 = arith.constant 0 : i32
    %c0_i32_0 = arith.constant 0 : i32
    %c0_i32_1 = arith.constant 0 : i32
    return %c0_i32, %c0_i32_0 : i32, i32
  }
  func.func @transform_11(%arg0: i32) -> (i32, i32) {
    %c0_i32 = arith.constant 0 : i32
    %c0_i32_0 = arith.constant 0 : i32
    %c0_i32_1 = arith.constant 0 : i32
    return %c0_i32, %c0_i32_0 : i32, i32
  }
  func.func @transform_12(%arg0: i32) -> (i32, i32) {
    %c0_i32 = arith.constant 0 : i32
    %c0_i32_0 = arith.constant 0 : i32
    %c0_i32_1 = arith.constant 0 : i32
    return %c0_i32, %c0_i32_0 : i32, i32
  }
  func.func @transform_13(%arg0: i32) -> (i32, i32, i32) {
    %c0_i32 = arith.constant 0 : i32
    %c0_i32_0 = arith.constant 0 : i32
    %c0_i32_1 = arith.constant 0 : i32
    return %arg0, %c0_i32, %c0_i32_0 : i32, i32, i32
  }
}

</mosaic_0001>

<llo_original>
// kernel: c2_forward.1
$region0: #{c2_forward.1}
  #allocation0 [shape = 'u32[]', space=smem, size = 0x4, offset = 0x4, fixed_abs, tag = 'smem constant byte address 0x4 - core index']
  #allocation1 [shape = 'u32[144,128]{1,0:T(1,128)}', space=vmem, size = 0x12000, scoped, tag = 'internal scratch']
  %s0 = inlined_call_operand.hbm [shape: f32[2,4,256], index: 0, kind: input, shape index: {}]
  %s1 = inlined_call_operand.hbm [shape: f32[9,1,256], index: 1, kind: input, shape index: {}]
  %s2 = inlined_call_operand.hbm [shape: bf16[2,4], index: 2, kind: input, shape index: {}]
  %s3 = inlined_call_operand.hbm [shape: f32[2,1], index: 3, kind: input, shape index: {}]
  %s4 = inlined_call_operand.hbm [shape: bf16[2,4], index: 4, kind: input, shape index: {}]
  %s5 = inlined_call_operand.hbm [shape: f32[2,1], index: 5, kind: input, shape index: {}]
  %s6 = inlined_call_operand.hbm [shape: bf16[1,2,18], index: 6, kind: input, shape index: {}]
  %s7 = inlined_call_operand.hbm [shape: f32[1,2,1], index: 7, kind: input, shape index: {}]
  %s8 = inlined_call_operand.hbm [shape: bf16[1,2,18], index: 8, kind: input, shape index: {}]
  %s9 = inlined_call_operand.hbm [shape: f32[1,2,1], index: 9, kind: input, shape index: {}]
  %s10 = inlined_call_operand.hbm [shape: bf16[4,2], index: 10, kind: input, shape index: {}]
  %s11 = inlined_call_operand.hbm [shape: bf16[4,2], index: 11, kind: input, shape index: {}]
  %s12 = inlined_call_operand.hbm [shape: f32[4,1], index: 12, kind: input, shape index: {}]
  %s13 = inlined_call_operand.hbm [shape: f32[2,4,256], index: 13, kind: output, shape index: {}]
  %s14 = sld [smem:[#allocation0]]
  $region137: #{c2_forward.1} parent=0
    _
  %s16 = ssub.s32 1, %s14
  %s17 = scalar_select 0, %s16, %s14
  $region1: #{c2_forward.1} parent=0
    #allocation2 [shape = 'u8[8192]{0}', space=vmem, size = 0x2000, scoped, tag = 'input window, operand 0']
    #allocation3 [shape = 's32[2]{0}', space=sflag, size = 0x8, scoped, tag = 'scoped memory for c2_forward.1']
    #allocation4 [shape = 's32[2]{0}', space=sflag, size = 0x8, scoped, tag = 'scoped memory for c2_forward.1']
    #allocation5 [shape = 'u8[9216]{0}', space=vmem, size = 0x2400, scoped, tag = 'input window, operand 1, single buffered']
    #allocation6 [shape = 's32[1]{0}', space=sflag, size = 0x4, scoped, tag = 'scoped memory for c2_forward.1']
    #allocation7 [shape = 'u8[512]{0}', space=vmem, size = 0x400, scoped, tag = 'input window, operand 2, single buffered']
    #allocation8 [shape = 'u8[1024]{0}', space=vmem, size = 0x400, scoped, tag = 'input window, operand 3, single buffered']
    #allocation9 [shape = 's32[1]{0}', space=sflag, size = 0x4, scoped, tag = 'scoped memory for c2_forward.1']
    #allocation10 [shape = 'u8[512]{0}', space=vmem, size = 0x400, scoped, tag = 'input window, operand 4, single buffered']
    #allocation11 [shape = 'u8[1024]{0}', space=vmem, size = 0x400, scoped, tag = 'input window, operand 5, single buffered']
    #allocation12 [shape = 's32[1]{0}', space=sflag, size = 0x4, scoped, tag = 'scoped memory for c2_forward.1']
    #allocation13 [shape = 'u8[512]{0}', space=vmem, size = 0x400, scoped, tag = 'input window, operand 6, single buffered']
    #allocation14 [shape = 'u8[1024]{0}', space=vmem, size = 0x400, scoped, tag = 'input window, operand 7, single buffered']
    #allocation15 [shape = 's32[1]{0}', space=sflag, size = 0x4, scoped, tag = 'scoped memory for c2_forward.1']
    #allocation16 [shape = 'u8[512]{0}', space=vmem, size = 0x400, scoped, tag = 'input window, operand 8, single buffered']
    #allocation17 [shape = 'u8[1024]{0}', space=vmem, size = 0x400, scoped, tag = 'input window, operand 9, single buffered']
    #allocation18 [shape = 's32[1]{0}', space=sflag, size = 0x4, scoped, tag = 'scoped memory for c2_forward.1']
    #allocation19 [shape = 'u8[1024]{0}', space=vmem, size = 0x400, scoped, tag = 'input window, operand 10, single buffered']
    #allocation20 [shape = 'u8[1024]{0}', space=vmem, size = 0x400, scoped, tag = 'input window, operand 11, single buffered']
    #allocation21 [shape = 's32[1]{0}', space=sflag, size = 0x4, scoped, tag = 'scoped memory for c2_forward.1']
    #allocation22 [shape = 'u8[2048]{0}', space=vmem, size = 0x800, scoped, tag = 'input window, operand 12, single buffered']
    #allocation23 [shape = 'u8[8192]{0}', space=vmem, size = 0x2000, scoped, tag = 'output window, operand 0']
    %18 = vsyncpa [#allocation3], 0
    %s19 = scalar_lea.sflag [#allocation3], 1
    %20 = vsyncpa %s19, 0
    %21 = vsyncpa [#allocation6], 0
    %22 = vsyncpa [#allocation9], 0
    %23 = vsyncpa [#allocation12], 0
    %24 = vsyncpa [#allocation15], 0
    %25 = vsyncpa [#allocation18], 0
    %26 = vsyncpa [#allocation21], 0
    %27 = vsyncpa [#allocation4], 0
    %s28 = scalar_lea.sflag [#allocation4], 1
    %29 = vsyncpa %s28, 0
    loop: start=0, step=1, limit=4
    $region2: #{c2_forward.1} parent=1 // loop_pre_header
      _
    $region3: #{c2_forward.1} parent=1 // loop_header
      %s31 = sphi 0, %s35
      %p32 = scmp.ge.s32.totalorder %s31, 4
      %s41 = sphi 0, %s43
      %s44 = sphi 0, %s41
      %s45 = sphi 0, %s44
      %s61 = sphi 0, %s45
      %s65 = sphi 0, %s65
      %s67 = sphi 0, %s65
      %s68 = sphi 0, %s67
      %s82 = sphi 0, %s68
      %s86 = sphi 0, %s86
      %s88 = sphi 0, %s86
      %s89 = sphi 0, %s88
      %s103 = sphi 0, %s89
      %s107 = sphi 0, %s107
      %s109 = sphi 0, %s107
      %s110 = sphi 0, %s109
      %s124 = sphi 0, %s110
      %s128 = sphi 0, %s128
      %s130 = sphi 0, %s128
      %s131 = sphi 0, %s130
      %s145 = sphi 0, %s131
      %s149 = sphi 0, %s149
      %s151 = sphi 0, %s149
      %s152 = sphi 0, %s151
      %s166 = sphi 0, %s152
      %s170 = sphi 0, %s170
      %s172 = sphi 0, %s170
      %s173 = sphi 0, %s172
      %s187 = sphi 0, %s173
      %s191 = sphi 0, %s191
      %s193 = sphi 0, %s191
      %s194 = sphi 0, %s193
      %s208 = sphi 0, %s194
      %s212 = sphi 0, %s212
      %s214 = sphi 0, %s212
      %s215 = sphi 0, %s214
      %s229 = sphi 0, %s215
      %s233 = sphi 0, %s233
      %s235 = sphi 0, %s233
      %s236 = sphi 0, %s235
      %s250 = sphi 0, %s236
      %s254 = sphi 0, %s254
      %s256 = sphi 0, %s254
      %s257 = sphi 0, %s256
      %s271 = sphi 0, %s257
      %s275 = sphi 0, %s275
      %s277 = sphi 0, %s275
      %s278 = sphi 0, %s277
      %s292 = sphi 0, %s278
      %s296 = sphi 0, %s296
      %s298 = sphi 0, %s296
      %s299 = sphi 0, %s298
      %s313 = sphi 0, %s299
      %s319 = sphi 0, %s321
      %s322 = sphi 0, %s319
      %s323 = sphi 0, %s322
      %s339 = sphi 0, %s323
    $region4: #{c2_forward.1} parent=1 // loop_header_branch
      %34 = sbr.rel (%p32) target = $region8
    $region5: #{c2_forward.1} parent=1 // loop_body
      %s36 = ssub.s32 %s31, 1
      %s37 = ssub.s32 %s31, 2
      %s38 = sadd.s32 %s31, 1
      %s39 = ssub.s32 %s31, %s38
      %p40 = scmp.eq.s32.totalorder %s39, 0
      %s42 = sadd.s32 %s41, 1
      %s43 = scalar_select %p40, %s41, %s42
      %p46 = pneg %p40
      %p47 = scmp.eq.s32.totalorder %s31, 1
      %p48 = por %p46, %p47
      %p49 = scmp.ne.s32.totalorder %s41, %s44
      %p50 = scmp.eq.s32.totalorder %s31, 0
      %p51 = por %p49, %p50
      %p52 = scmp.ne.s32.totalorder %s41, %s44
      %p53 = scmp.eq.s32.totalorder %s36, 1
      %p54 = por %p52, %p53
      %p55 = scmp.ne.s32.totalorder %s44, %s45
      %p56 = scmp.eq.s32.totalorder %s36, 0
      %p57 = por %p55, %p56
      %p58 = scmp.ne.s32.totalorder %s44, %s45
      %p59 = scmp.eq.s32.totalorder %s37, 1
      %p60 = por %p58, %p59
      %p62 = scmp.ne.s32.totalorder %s45, %s61
      %p63 = scmp.eq.s32.totalorder %s37, 0
      %p64 = por %p62, %p63
      %s66 = sadd.s32 %s65, 1
      %p69 = scmp.eq.s32.totalorder %s31, 1
      %p70 = scmp.ne.s32.totalorder %s65, %s67
      %p71 = scmp.eq.s32.totalorder %s31, 0
      %p72 = por %p70, %p71
      %p73 = scmp.ne.s32.totalorder %s65, %s67
      %p74 = scmp.eq.s32.totalorder %s36, 1
      %p75 = por %p73, %p74
      %p76 = scmp.ne.s32.totalorder %s67, %s68
      %p77 = scmp.eq.s32.totalorder %s36, 0
      %p78 = por %p76, %p77
      %p79 = scmp.ne.s32.totalorder %s67, %s68
      %p80 = scmp.eq.s32.totalorder %s37, 1
      %p81 = por %p79, %p80
      %p83 = scmp.ne.s32.totalorder %s68, %s82
      %p84 = scmp.eq.s32.totalorder %s37, 0
      %p85 = por %p83, %p84
      %s87 = sadd.s32 %s86, 1
      %p90 = scmp.eq.s32.totalorder %s31, 1
      %p91 = scmp.ne.s32.totalorder %s86, %s88
      %p92 = scmp.eq.s32.totalorder %s31, 0
      %p93 = por %p91, %p92
      %p94 = scmp.ne.s32.totalorder %s86, %s88
      %p95 = scmp.eq.s32.totalorder %s36, 1
      %p96 = por %p94, %p95
      %p97 = scmp.ne.s32.totalorder %s88, %s89
      %p98 = scmp.eq.s32.totalorder %s36, 0
      %p99 = por %p97, %p98
      %p100 = scmp.ne.s32.totalorder %s88, %s89
      %p101 = scmp.eq.s32.totalorder %s37, 1
      %p102 = por %p100, %p101
      %p104 = scmp.ne.s32.totalorder %s89, %s103
      %p105 = scmp.eq.s32.totalorder %s37, 0
      %p106 = por %p104, %p105
      %s108 = sadd.s32 %s107, 1
      %p111 = scmp.eq.s32.totalorder %s31, 1
      %p112 = scmp.ne.s32.totalorder %s107, %s109
      %p113 = scmp.eq.s32.totalorder %s31, 0
      %p114 = por %p112, %p113
      %p115 = scmp.ne.s32.totalorder %s107, %s109
      %p116 = scmp.eq.s32.totalorder %s36, 1
      %p117 = por %p115, %p116
      %p118 = scmp.ne.s32.totalorder %s109, %s110
      %p119 = scmp.eq.s32.totalorder %s36, 0
      %p120 = por %p118, %p119
      %p121 = scmp.ne.s32.totalorder %s109, %s110
      %p122 = scmp.eq.s32.totalorder %s37, 1
      %p123 = por %p121, %p122
      %p125 = scmp.ne.s32.totalorder %s110, %s124
      %p126 = scmp.eq.s32.totalorder %s37, 0
      %p127 = por %p125, %p126
      %s129 = sadd.s32 %s128, 1
      %p132 = scmp.eq.s32.totalorder %s31, 1
      %p133 = scmp.ne.s32.totalorder %s128, %s130
      %p134 = scmp.eq.s32.totalorder %s31, 0
      %p135 = por %p133, %p134
      %p136 = scmp.ne.s32.totalorder %s128, %s130
      %p137 = scmp.eq.s32.totalorder %s36, 1
      %p138 = por %p136, %p137
      %p139 = scmp.ne.s32.totalorder %s130, %s131
      %p140 = scmp.eq.s32.totalorder %s36, 0
      %p141 = por %p139, %p140
      %p142 = scmp.ne.s32.totalorder %s130, %s131
      %p143 = scmp.eq.s32.totalorder %s37, 1
      %p144 = por %p142, %p143
      %p146 = scmp.ne.s32.totalorder %s131, %s145
      %p147 = scmp.eq.s32.totalorder %s37, 0
      %p148 = por %p146, %p147
      %s150 = sadd.s32 %s149, 1
      %p153 = scmp.eq.s32.totalorder %s31, 1
      %p154 = scmp.ne.s32.totalorder %s149, %s151
      %p155 = scmp.eq.s32.totalorder %s31, 0
      %p156 = por %p154, %p155
      %p157 = scmp.ne.s32.totalorder %s149, %s151
      %p158 = scmp.eq.s32.totalorder %s36, 1
      %p159 = por %p157, %p158
      %p160 = scmp.ne.s32.totalorder %s151, %s152
      %p161 = scmp.eq.s32.totalorder %s36, 0
      %p162 = por %p160, %p161
      %p163 = scmp.ne.s32.totalorder %s151, %s152
      %p164 = scmp.eq.s32.totalorder %s37, 1
      %p165 = por %p163, %p164
      %p167 = scmp.ne.s32.totalorder %s152, %s166
      %p168 = scmp.eq.s32.totalorder %s37, 0
      %p169 = por %p167, %p168
      %s171 = sadd.s32 %s170, 1
      %p174 = scmp.eq.s32.totalorder %s31, 1
      %p175 = scmp.ne.s32.totalorder %s170, %s172
      %p176 = scmp.eq.s32.totalorder %s31, 0
      %p177 = por %p175, %p176
      %p178 = scmp.ne.s32.totalorder %s170, %s172
      %p179 = scmp.eq.s32.totalorder %s36, 1
      %p180 = por %p178, %p179
      %p181 = scmp.ne.s32.totalorder %s172, %s173
      %p182 = scmp.eq.s32.totalorder %s36, 0
      %p183 = por %p181, %p182
      %p184 = scmp.ne.s32.totalorder %s172, %s173
      %p185 = scmp.eq.s32.totalorder %s37, 1
      %p186 = por %p184, %p185
      %p188 = scmp.ne.s32.totalorder %s173, %s187
      %p189 = scmp.eq.s32.totalorder %s37, 0
      %p190 = por %p188, %p189
      %s192 = sadd.s32 %s191, 1
      %p195 = scmp.eq.s32.totalorder %s31, 1
      %p196 = scmp.ne.s32.totalorder %s191, %s193
      %p197 = scmp.eq.s32.totalorder %s31, 0
      %p198 = por %p196, %p197
      %p199 = scmp.ne.s32.totalorder %s191, %s193
      %p200 = scmp.eq.s32.totalorder %s36, 1
      %p201 = por %p199, %p200
      %p202 = scmp.ne.s32.totalorder %s193, %s194
      %p203 = scmp.eq.s32.totalorder %s36, 0
      %p204 = por %p202, %p203
      %p205 = scmp.ne.s32.totalorder %s193, %s194
      %p206 = scmp.eq.s32.totalorder %s37, 1
      %p207 = por %p205, %p206
      %p209 = scmp.ne.s32.totalorder %s194, %s208
      %p210 = scmp.eq.s32.totalorder %s37, 0
      %p211 = por %p209, %p210
      %s213 = sadd.s32 %s212, 1
      %p216 = scmp.eq.s32.totalorder %s31, 1
      %p217 = scmp.ne.s32.totalorder %s212, %s214
      %p218 = scmp.eq.s32.totalorder %s31, 0
      %p219 = por %p217, %p218
      %p220 = scmp.ne.s32.totalorder %s212, %s214
      %p221 = scmp.eq.s32.totalorder %s36, 1
      %p222 = por %p220, %p221
      %p223 = scmp.ne.s32.totalorder %s214, %s215
      %p224 = scmp.eq.s32.totalorder %s36, 0
      %p225 = por %p223, %p224
      %p226 = scmp.ne.s32.totalorder %s214, %s215
      %p227 = scmp.eq.s32.totalorder %s37, 1
      %p228 = por %p226, %p227
      %p230 = scmp.ne.s32.totalorder %s215, %s229
      %p231 = scmp.eq.s32.totalorder %s37, 0
      %p232 = por %p230, %p231
      %s234 = sadd.s32 %s233, 1
      %p237 = scmp.eq.s32.totalorder %s31, 1
      %p238 = scmp.ne.s32.totalorder %s233, %s235
      %p239 = scmp.eq.s32.totalorder %s31, 0
      %p240 = por %p238, %p239
      %p241 = scmp.ne.s32.totalorder %s233, %s235
      %p242 = scmp.eq.s32.totalorder %s36, 1
      %p243 = por %p241, %p242
      %p244 = scmp.ne.s32.totalorder %s235, %s236
      %p245 = scmp.eq.s32.totalorder %s36, 0
      %p246 = por %p244, %p245
      %p247 = scmp.ne.s32.totalorder %s235, %s236
      %p248 = scmp.eq.s32.totalorder %s37, 1
      %p249 = por %p247, %p248
      %p251 = scmp.ne.s32.totalorder %s236, %s250
      %p252 = scmp.eq.s32.totalorder %s37, 0
      %p253 = por %p251, %p252
      %s255 = sadd.s32 %s254, 1
      %p258 = scmp.eq.s32.totalorder %s31, 1
      %p259 = scmp.ne.s32.totalorder %s254, %s256
      %p260 = scmp.eq.s32.totalorder %s31, 0
      %p261 = por %p259, %p260
      %p262 = scmp.ne.s32.totalorder %s254, %s256
      %p263 = scmp.eq.s32.totalorder %s36, 1
      %p264 = por %p262, %p263
      %p265 = scmp.ne.s32.totalorder %s256, %s257
      %p266 = scmp.eq.s32.totalorder %s36, 0
      %p267 = por %p265, %p266
      %p268 = scmp.ne.s32.totalorder %s256, %s257
      %p269 = scmp.eq.s32.totalorder %s37, 1
      %p270 = por %p268, %p269
      %p272 = scmp.ne.s32.totalorder %s257, %s271
      %p273 = scmp.eq.s32.totalorder %s37, 0
      %p274 = por %p272, %p273
      %s276 = sadd.s32 %s275, 1
      %p279 = scmp.eq.s32.totalorder %s31, 1
      %p280 = scmp.ne.s32.totalorder %s275, %s277
      %p281 = scmp.eq.s32.totalorder %s31, 0
      %p282 = por %p280, %p281
      %p283 = scmp.ne.s32.totalorder %s275, %s277
      %p284 = scmp.eq.s32.totalorder %s36, 1
      %p285 = por %p283, %p284
      %p286 = scmp.ne.s32.totalorder %s277, %s278
      %p287 = scmp.eq.s32.totalorder %s36, 0
      %p288 = por %p286, %p287
      %p289 = scmp.ne.s32.totalorder %s277, %s278
      %p290 = scmp.eq.s32.totalorder %s37, 1
      %p291 = por %p289, %p290
      %p293 = scmp.ne.s32.totalorder %s278, %s292
      %p294 = scmp.eq.s32.totalorder %s37, 0
      %p295 = por %p293, %p294
      %s297 = sadd.s32 %s296, 1
      %p300 = scmp.eq.s32.totalorder %s31, 1
      %p301 = scmp.ne.s32.totalorder %s296, %s298
      %p302 = scmp.eq.s32.totalorder %s31, 0
      %p303 = por %p301, %p302
      %p304 = scmp.ne.s32.totalorder %s296, %s298
      %p305 = scmp.eq.s32.totalorder %s36, 1
      %p306 = por %p304, %p305
      %p307 = scmp.ne.s32.totalorder %s298, %s299
      %p308 = scmp.eq.s32.totalorder %s36, 0
      %p309 = por %p307, %p308
      %p310 = scmp.ne.s32.totalorder %s298, %s299
      %p311 = scmp.eq.s32.totalorder %s37, 1
      %p312 = por %p310, %p311
      %p314 = scmp.ne.s32.totalorder %s299, %s313
      %p315 = scmp.eq.s32.totalorder %s37, 0
      %p316 = por %p314, %p315
      %s317 = ssub.s32 %s31, %s38
      %p318 = scmp.eq.s32.totalorder %s317, 0
      %s320 = sadd.s32 %s319, 1
      %s321 = scalar_select %p318, %s319, %s320
      %p324 = pneg %p318
      %p325 = scmp.eq.s32.totalorder %s31, 1
      %p326 = por %p324, %p325
      %p327 = scmp.ne.s32.totalorder %s319, %s322
      %p328 = scmp.eq.s32.totalorder %s31, 0
      %p329 = por %p327, %p328
      %p330 = scmp.ne.s32.totalorder %s319, %s322
      %p331 = scmp.eq.s32.totalorder %s36, 1
      %p332 = por %p330, %p331
      %p333 = scmp.ne.s32.totalorder %s322, %s323
      %p334 = scmp.eq.s32.totalorder %s36, 0
      %p335 = por %p333, %p334
      %p336 = scmp.ne.s32.totalorder %s322, %s323
      %p337 = scmp.eq.s32.totalorder %s37, 1
      %p338 = por %p336, %p337
      %p340 = scmp.ne.s32.totalorder %s323, %s339
      %p341 = scmp.eq.s32.totalorder %s37, 0
      %p342 = por %p340, %p341
      %p343 = scmp.le.s32.totalorder 1, %s31
      %p344 = scmp.lt.s32.totalorder %s31, 3
      %p345 = pnand %p343, %p344
      %p346 = pneg %p345
      // Predicated region
      $region9: #{c2_forward.1} parent=5 // pred_check
        _
      $region10: #{c2_forward.1} parent=5 // pred_check_branch
        %348 = sbr.rel (%p345) target = $region12
      $region11: #{c2_forward.1} parent=5 // pred_region
        %s349 = ssub.s32 %s31, 1
        // Predicated region
        $region13: #{c2_forward.1} parent=11 // pred_check
          %p350 = pneg %p78
        $region14: #{c2_forward.1} parent=11 // pred_check_branch
          %352 = sbr.rel (%p350) target = $region16
        $region15: #{c2_forward.1} parent=11 // pred_region
          %s354 = ssub.s32 288, 288
          %355 = vsyncadd [#allocation6], %s354
          %s356 = sshll.u32 [#allocation5], 4
          %s357 = int_to_ptr.vmem [resolvable:$true] %s356
          %362 = dma.hbm_to_vmem [thread:$0]  %s1, 288, %s357, [#allocation6], 32, 32, 2
        $region16: #{c2_forward.1} parent=11 // pred_fallthru
          _
        // Predicated region
        $region17: #{c2_forward.1} parent=11 // pred_check
          %p363 = pneg %p99
        $region18: #{c2_forward.1} parent=11 // pred_check_branch
          %365 = sbr.rel (%p363) target = $region20
        $region19: #{c2_forward.1} parent=11 // pred_region
          %s367 = ssub.s32 16, 16
          %368 = vsyncadd [#allocation6], %s367
          %s370 = sshll.u32 [#allocation7], 4
          %s371 = int_to_ptr.vmem [resolvable:$true] %s370
          %373 = dma.hbm_to_vmem [thread:$0]  %s2, 16, %s371, [#allocation6]
        $region20: #{c2_forward.1} parent=11 // pred_fallthru
          _
        // Predicated region
        $region21: #{c2_forward.1} parent=11 // pred_check
          %p374 = pneg %p120
        $region22: #{c2_forward.1} parent=11 // pred_check_branch
          %376 = sbr.rel (%p374) target = $region24
        $region23: #{c2_forward.1} parent=11 // pred_region
          %s378 = ssub.s32 32, 32
          %379 = vsyncadd [#allocation9], %s378
          %s381 = sshll.u32 [#allocation8], 4
          %s382 = int_to_ptr.vmem [resolvable:$true] %s381
          %384 = dma.hbm_to_vmem [thread:$0]  %s3, 32, %s382, [#allocation9]
        $region24: #{c2_forward.1} parent=11 // pred_fallthru
          _
        // Predicated region
        $region25: #{c2_forward.1} parent=11 // pred_check
          %p385 = pneg %p141
        $region26: #{c2_forward.1} parent=11 // pred_check_branch
          %387 = sbr.rel (%p385) target = $region28
        $region27: #{c2_forward.1} parent=11 // pred_region
          %s389 = ssub.s32 16, 16
          %390 = vsyncadd [#allocation9], %s389
          %s392 = sshll.u32 [#allocation10], 4
          %s393 = int_to_ptr.vmem [resolvable:$true] %s392
          %395 = dma.hbm_to_vmem [thread:$0]  %s4, 16, %s393, [#allocation9]
        $region28: #{c2_forward.1} parent=11 // pred_fallthru
          _
        // Predicated region
        $region29: #{c2_forward.1} parent=11 // pred_check
          %p396 = pneg %p162
        $region30: #{c2_forward.1} parent=11 // pred_check_branch
          %398 = sbr.rel (%p396) target = $region32
        $region31: #{c2_forward.1} parent=11 // pred_region
          %s400 = ssub.s32 32, 32
          %401 = vsyncadd [#allocation12], %s400
          %s403 = sshll.u32 [#allocation11], 4
          %s404 = int_to_ptr.vmem [resolvable:$true] %s403
          %406 = dma.hbm_to_vmem [thread:$0]  %s5, 32, %s404, [#allocation12]
        $region32: #{c2_forward.1} parent=11 // pred_fallthru
          _
        // Predicated region
        $region33: #{c2_forward.1} parent=11 // pred_check
          %p407 = pneg %p183
        $region34: #{c2_forward.1} parent=11 // pred_check_branch
          %409 = sbr.rel (%p407) target = $region36
        $region35: #{c2_forward.1} parent=11 // pred_region
          %s411 = ssub.s32 16, 16
          %412 = vsyncadd [#allocation12], %s411
          %s414 = sshll.u32 [#allocation13], 4
          %s415 = int_to_ptr.vmem [resolvable:$true] %s414
          %417 = dma.hbm_to_vmem [thread:$0]  %s6, 16, %s415, [#allocation12]
        $region36: #{c2_forward.1} parent=11 // pred_fallthru
          _
        // Predicated region
        $region37: #{c2_forward.1} parent=11 // pred_check
          %p418 = pneg %p204
        $region38: #{c2_forward.1} parent=11 // pred_check_branch
          %420 = sbr.rel (%p418) target = $region40
        $region39: #{c2_forward.1} parent=11 // pred_region
          %s422 = ssub.s32 32, 32
          %423 = vsyncadd [#allocation15], %s422
          %s425 = sshll.u32 [#allocation14], 4
          %s426 = int_to_ptr.vmem [resolvable:$true] %s425
          %428 = dma.hbm_to_vmem [thread:$0]  %s7, 32, %s426, [#allocation15]
        $region40: #{c2_forward.1} parent=11 // pred_fallthru
          _
        // Predicated region
        $region41: #{c2_forward.1} parent=11 // pred_check
          %p429 = pneg %p225
        $region42: #{c2_forward.1} parent=11 // pred_check_branch
          %431 = sbr.rel (%p429) target = $region44
        $region43: #{c2_forward.1} parent=11 // pred_region
          %s433 = ssub.s32 16, 16
          %434 = vsyncadd [#allocation15], %s433
          %s436 = sshll.u32 [#allocation16], 4
          %s437 = int_to_ptr.vmem [resolvable:$true] %s436
          %439 = dma.hbm_to_vmem [thread:$0]  %s8, 16, %s437, [#allocation15]
        $region44: #{c2_forward.1} parent=11 // pred_fallthru
          _
        // Predicated region
        $region45: #{c2_forward.1} parent=11 // pred_check
          %p440 = pneg %p246
        $region46: #{c2_forward.1} parent=11 // pred_check_branch
          %442 = sbr.rel (%p440) target = $region48
        $region47: #{c2_forward.1} parent=11 // pred_region
          %s444 = ssub.s32 32, 32
          %445 = vsyncadd [#allocation18], %s444
          %s447 = sshll.u32 [#allocation17], 4
          %s448 = int_to_ptr.vmem [resolvable:$true] %s447
          %450 = dma.hbm_to_vmem [thread:$0]  %s9, 32, %s448, [#allocation18]
        $region48: #{c2_forward.1} parent=11 // pred_fallthru
          _
        // Predicated region
        $region49: #{c2_forward.1} parent=11 // pred_check
          %p451 = pneg %p267
        $region50: #{c2_forward.1} parent=11 // pred_check_branch
          %453 = sbr.rel (%p451) target = $region52
        $region51: #{c2_forward.1} parent=11 // pred_region
          %s455 = ssub.s32 32, 32
          %456 = vsyncadd [#allocation18], %s455
          %s458 = sshll.u32 [#allocation19], 4
          %s459 = int_to_ptr.vmem [resolvable:$true] %s458
          %461 = dma.hbm_to_vmem [thread:$0]  %s10, 32, %s459, [#allocation18]
        $region52: #{c2_forward.1} parent=11 // pred_fallthru
          _
        // Predicated region
        $region53: #{c2_forward.1} parent=11 // pred_check
          %p462 = pneg %p288
        $region54: #{c2_forward.1} parent=11 // pred_check_branch
          %464 = sbr.rel (%p462) target = $region56
        $region55: #{c2_forward.1} parent=11 // pred_region
          %s466 = ssub.s32 32, 32
          %467 = vsyncadd [#allocation21], %s466
          %s469 = sshll.u32 [#allocation20], 4
          %s470 = int_to_ptr.vmem [resolvable:$true] %s469
          %472 = dma.hbm_to_vmem [thread:$0]  %s11, 32, %s470, [#allocation21]
        $region56: #{c2_forward.1} parent=11 // pred_fallthru
          _
        // Predicated region
        $region57: #{c2_forward.1} parent=11 // pred_check
          %p473 = pneg %p309
        $region58: #{c2_forward.1} parent=11 // pred_check_branch
          %475 = sbr.rel (%p473) target = $region60
        $region59: #{c2_forward.1} parent=11 // pred_region
          %s477 = ssub.s32 64, 64
          %478 = vsyncadd [#allocation21], %s477
          %s480 = sshll.u32 [#allocation22], 4
          %s481 = int_to_ptr.vmem [resolvable:$true] %s480
          %483 = dma.hbm_to_vmem [thread:$0]  %s12, 64, %s481, [#allocation21]
        $region60: #{c2_forward.1} parent=11 // pred_fallthru
          _
      $region12: #{c2_forward.1} parent=5 // pred_fallthru
        _
      %p484 = scmp.lt.s32.totalorder %s31, 2
      // Predicated region
      $region61: #{c2_forward.1} parent=5 // pred_check
        %p485 = pneg %p484
      $region62: #{c2_forward.1} parent=5 // pred_check_branch
        %487 = sbr.rel (%p485) target = $region64
      $region63: #{c2_forward.1} parent=5 // pred_region
        // Predicated region
        $region65: #{c2_forward.1} parent=63 // pred_check
          %p488 = pneg %p51
        $region66: #{c2_forward.1} parent=63 // pred_check_branch
          %490 = sbr.rel (%p488) target = $region68
        $region67: #{c2_forward.1} parent=63 // pred_region
          %s491 = sand.u32 %s41, 1
          %s492 = scalar_lea.sflag [#allocation3], %s491
          %s493 = sand.u32 %s41, 1
          %s494 = smul.addr %s493, 8
          %s495 = scalar_lea.vmem [#allocation2], %s494
          %s497 = ssub.s32 128, 128
          %498 = vsyncadd %s492, %s497
          %s499 = smul.addr %s31, 2
          %s500 = smul.addr %s499, 64
          %s501 = scalar_lea.hbm %s0, %s500
          %s503 = sshll.u32 %s495, 4
          %s504 = int_to_ptr.vmem [resolvable:$true] %s503
          %506 = dma.hbm_to_vmem [thread:$0]  %s501, 128, %s504, %s492
        $region68: #{c2_forward.1} parent=63 // pred_fallthru
          _
      $region64: #{c2_forward.1} parent=5 // pred_fallthru
        _
      %p507 = scmp.le.s32.totalorder 1, %s31
      %p508 = scmp.lt.s32.totalorder %s31, 3
      %p509 = pnand %p507, %p508
      %p510 = pneg %p509
      // Predicated region
      $region69: #{c2_forward.1} parent=5 // pred_check
        _
      $region70: #{c2_forward.1} parent=5 // pred_check_branch
        %512 = sbr.rel (%p509) target = $region72
      $region71: #{c2_forward.1} parent=5 // pred_region
        %s513 = ssub.s32 %s31, 1
        %s514 = sand.u32 %s44, 1
        %s515 = scalar_lea.sflag [#allocation3], %s514
        %s516 = sand.u32 %s44, 1
        %s517 = smul.addr %s516, 8
        %s518 = scalar_lea.vmem [#allocation2], %s517
        // Predicated region
        $region73: #{c2_forward.1} parent=71 // pred_check
          %p519 = pneg %p57
        $region74: #{c2_forward.1} parent=71 // pred_check_branch
          %521 = sbr.rel (%p519) target = $region76
        $region75: #{c2_forward.1} parent=71 // pred_region
          %522 = dma.done %s515, 128
        $region76: #{c2_forward.1} parent=71 // pred_fallthru
          _
        // Predicated region
        $region77: #{c2_forward.1} parent=71 // pred_check
          %p523 = pneg %p78
        $region78: #{c2_forward.1} parent=71 // pred_check_branch
          %525 = sbr.rel (%p523) target = $region80
        $region79: #{c2_forward.1} parent=71 // pred_region
          %526 = dma.done [#allocation6], 288
        $region80: #{c2_forward.1} parent=71 // pred_fallthru
          _
        // Predicated region
        $region81: #{c2_forward.1} parent=71 // pred_check
          %p527 = pneg %p99
        $region82: #{c2_forward.1} parent=71 // pred_check_branch
          %529 = sbr.rel (%p527) target = $region84
        $region83: #{c2_forward.1} parent=71 // pred_region
          %530 = dma.done [#allocation6], 16
        $region84: #{c2_forward.1} parent=71 // pred_fallthru
          _
        // Predicated region
        $region85: #{c2_forward.1} parent=71 // pred_check
          %p531 = pneg %p120
        $region86: #{c2_forward.1} parent=71 // pred_check_branch
          %533 = sbr.rel (%p531) target = $region88
        $region87: #{c2_forward.1} parent=71 // pred_region
          %534 = dma.done [#allocation9], 32
        $region88: #{c2_forward.1} parent=71 // pred_fallthru
          _
        // Predicated region
        $region89: #{c2_forward.1} parent=71 // pred_check
          %p535 = pneg %p141
        $region90: #{c2_forward.1} parent=71 // pred_check_branch
          %537 = sbr.rel (%p535) target = $region92
        $region91: #{c2_forward.1} parent=71 // pred_region
          %538 = dma.done [#allocation9], 16
        $region92: #{c2_forward.1} parent=71 // pred_fallthru
          _
        // Predicated region
        $region93: #{c2_forward.1} parent=71 // pred_check
          %p539 = pneg %p162
        $region94: #{c2_forward.1} parent=71 // pred_check_branch
          %541 = sbr.rel (%p539) target = $region96
        $region95: #{c2_forward.1} parent=71 // pred_region
          %542 = dma.done [#allocation12], 32
        $region96: #{c2_forward.1} parent=71 // pred_fallthru
          _
        // Predicated region
        $region97: #{c2_forward.1} parent=71 // pred_check
          %p543 = pneg %p183
        $region98: #{c2_forward.1} parent=71 // pred_check_branch
          %545 = sbr.rel (%p543) target = $region100
        $region99: #{c2_forward.1} parent=71 // pred_region
          %546 = dma.done [#allocation12], 16
        $region100: #{c2_forward.1} parent=71 // pred_fallthru
          _
        // Predicated region
        $region101: #{c2_forward.1} parent=71 // pred_check
          %p547 = pneg %p204
        $region102: #{c2_forward.1} parent=71 // pred_check_branch
          %549 = sbr.rel (%p547) target = $region104
        $region103: #{c2_forward.1} parent=71 // pred_region
          %550 = dma.done [#allocation15], 32
        $region104: #{c2_forward.1} parent=71 // pred_fallthru
          _
        // Predicated region
        $region105: #{c2_forward.1} parent=71 // pred_check
          %p551 = pneg %p225
        $region106: #{c2_forward.1} parent=71 // pred_check_branch
          %553 = sbr.rel (%p551) target = $region108
        $region107: #{c2_forward.1} parent=71 // pred_region
          %554 = dma.done [#allocation15], 16
        $region108: #{c2_forward.1} parent=71 // pred_fallthru
          _
        // Predicated region
        $region109: #{c2_forward.1} parent=71 // pred_check
          %p555 = pneg %p246
        $region110: #{c2_forward.1} parent=71 // pred_check_branch
          %557 = sbr.rel (%p555) target = $region112
        $region111: #{c2_forward.1} parent=71 // pred_region
          %558 = dma.done [#allocation18], 32
        $region112: #{c2_forward.1} parent=71 // pred_fallthru
          _
        // Predicated region
        $region113: #{c2_forward.1} parent=71 // pred_check
          %p559 = pneg %p267
        $region114: #{c2_forward.1} parent=71 // pred_check_branch
          %561 = sbr.rel (%p559) target = $region116
        $region115: #{c2_forward.1} parent=71 // pred_region
          %562 = dma.done [#allocation18], 32
        $region116: #{c2_forward.1} parent=71 // pred_fallthru
          _
        // Predicated region
        $region117: #{c2_forward.1} parent=71 // pred_check
          %p563 = pneg %p288
        $region118: #{c2_forward.1} parent=71 // pred_check_branch
          %565 = sbr.rel (%p563) target = $region120
        $region119: #{c2_forward.1} parent=71 // pred_region
          %566 = dma.done [#allocation21], 32
        $region120: #{c2_forward.1} parent=71 // pred_fallthru
          _
        // Predicated region
        $region121: #{c2_forward.1} parent=71 // pred_check
          %p567 = pneg %p309
        $region122: #{c2_forward.1} parent=71 // pred_check_branch
          %569 = sbr.rel (%p567) target = $region124
        $region123: #{c2_forward.1} parent=71 // pred_region
          %570 = dma.done [#allocation21], 64
        $region124: #{c2_forward.1} parent=71 // pred_fallthru
          _
        %s571 = sand.u32 %s44, 1
        %s572 = scalar_lea.sflag [#allocation3], %s571
        %s573 = sand.u32 %s44, 1
        %s574 = smul.addr %s573, 8
        %s575 = scalar_lea.vmem [#allocation2], %s574
        %p576 = pneg %p57
        %p577 = pneg %p54
        %p578 = pneg %p78
        %p579 = pneg %p75
        %p580 = pneg %p99
        %p581 = pneg %p96
        %p582 = pneg %p120
        %p583 = pneg %p117
        %p584 = pneg %p141
        %p585 = pneg %p138
        %p586 = pneg %p162
        %p587 = pneg %p159
        %p588 = pneg %p183
        %p589 = pneg %p180
        %p590 = pneg %p204
        %p591 = pneg %p201
        %p592 = pneg %p225
        %p593 = pneg %p222
        %p594 = pneg %p246
        %p595 = pneg %p243
        %p596 = pneg %p267
        %p597 = pneg %p264
        %p598 = pneg %p288
        %p599 = pneg %p285
        %p600 = pneg %p309
        %p601 = pneg %p306
        %p602 = pneg %p335
        %p603 = pneg %p332
        %s604 = sand.u32 %s322, 1
        %s605 = scalar_lea.sflag [#allocation4], %s604
        %s606 = sand.u32 %s322, 1
        %s607 = smul.addr %s606, 8
        %s608 = scalar_lea.vmem [#allocation23], %s607
        %v610 = vld [vmem:[%s518] sm:$0xff]
        %v612 = vcombine.high %v610, %v610
        %v614 = vpack.c.bf16 %v610, %v610
        %v615 = vpack.c.bf16 %v612, %v612
        %v616 = vld [vmem:[#allocation5] sm:$0x3]
        %v617 = vld [vmem:[#allocation5 + $0x2] sm:$0x3]
        %v618 = vld [vmem:[#allocation5 + $0x4] sm:$0x3]
        %v619 = vld [vmem:[#allocation5 + $0x6] sm:$0x3]
        %v620 = vld [vmem:[#allocation5 + $0xa] sm:$0x3]
        %v621 = vld [vmem:[#allocation5 + $0xc] sm:$0x3]
        %v622 = vld [vmem:[#allocation5 + $0xe] sm:$0x3]
        %v623 = vld [vmem:[#allocation5 + $0x10] sm:$0x3]
        %v624 = vld [vmem:[#allocation7] sm:$0x1]
        %v625 = vld [vmem:[#allocation8] sm:$0x3]
        %627 = vset.pattern.permute.xlu0 0
        %628 = vperm.xlu0 %627, %v625
        %v629 = vpop.permute.xlu0 %628
        %vm631 = vcmask 31744
        %v633 = vsel %vm631, %v624, 0
        %vm635 = vcmask 1041408
        %v637 = vsel %vm635, %v614, 0
        %v640 = vsel %vm635, %v615, 0
        %642 = vmatprep.subr.bf16.mxu0 %v640
        %643 = vmatpush1.bf16.msra.mxu0 %v637
        %644 = vmatprep.subr.bf16.mxu0 0
        %645 = vmatpush1.bf16.msra.mxu0 0
        %646 = vmatprep.subr.bf16.mxu0 0
        %647 = vmatpush1.bf16.msra.mxu0 0
        %648 = vmatprep.subr.bf16.mxu0 0
        %649 = vmatpush1.bf16.msra.mxu0 0
        %650 = vmatprep.subr.bf16.mxu0 0
        %651 = vmatpush1.bf16.msra.mxu0 0
        %652 = vmatprep.subr.bf16.mxu0 0
        %653 = vmatpush1.bf16.msra.mxu0 0
        %654 = vmatprep.subr.bf16.mxu0 0
        %655 = vmatpush1.bf16.msra.mxu0 0
        %656 = vmatprep.subr.bf16.mxu0 0
        %657 = vmatpush1.bf16.msra.mxu0 0
        %658 = vmatprep.subr.bf16.mxu0 0
        %659 = vmatpush1.bf16.msra.mxu0 0
        %660 = vmatprep.subr.bf16.mxu0 0
        %661 = vmatpush1.bf16.msra.mxu0 0
        %662 = vmatprep.subr.bf16.mxu0 0
        %663 = vmatpush1.bf16.msra.mxu0 0
        %664 = vmatprep.subr.bf16.mxu0 0
        %665 = vmatpush1.bf16.msra.mxu0 0
        %666 = vmatprep.subr.bf16.mxu0 0
        %667 = vmatpush1.bf16.msra.mxu0 0
        %668 = vmatprep.subr.bf16.mxu0 0
        %669 = vmatpush1.bf16.msra.mxu0 0
        %670 = vmatprep.subr.bf16.mxu0 0
        %671 = vmatpush1.bf16.msra.mxu0 0
        %672 = vmatprep.subr.bf16.mxu0 0
        %673 = vmatpush1.bf16.msra.mxu0 0
        %674 = vmatprep.mubr.bf16.mxu0 0
        %675 = vmatmul.mubr.bf16.gmra.mrb[0].mxu0 %v633
        %v676 = vpop.f32.mrb[0].mxu0
        %v677 = vadd.f32 %v629, %v676
        %v678 = vpop.f32.mrb[0].mxu0
        %v679 = vadd.f32 %v629, %v678
        %v680 = vpop.f32.mrb[0].mxu0
        %v681 = vpop.f32.mrb[0].mxu0
        %682 = vdwg.mxu0
        %v683 = vsub.f32 0.0, %v677
        %v684 = vsub.f32 0.0, %v679
        %v685 = vmul.f32 %v683, 1.442695
        %v686 = vpow.pop %v685
        %v687 = vmul.f32 %v684, 1.442695
        %v688 = vpow.pop %v687
        %v689 = vadd.f32 %v686, 1.0
        %v690 = vadd.f32 %v688, 1.0
        %v691 = vrcp.pop %v689
        %v692 = vrcp.pop %v690
        %v693 = vmul.f32 %v677, %v691
        %v694 = vmul.f32 %v679, %v692
        %v695 = vld [vmem:[#allocation10] sm:$0x1]
        %v696 = vld [vmem:[#allocation11] sm:$0x3]
        %698 = vset.pattern.permute.xlu0 0
        %699 = vperm.xlu0 %698, %v696
        %v700 = vpop.permute.xlu0 %699
        %v703 = vsel %vm631, %v695, 0
        %705 = vmatprep.subr.bf16.mxu0 %v640
        %706 = vmatpush1.bf16.msra.mxu0 %v637
        %707 = vmatprep.subr.bf16.mxu0 0
        %708 = vmatpush1.bf16.msra.mxu0 0
        %709 = vmatprep.subr.bf16.mxu0 0
        %710 = vmatpush1.bf16.msra.mxu0 0
        %711 = vmatprep.subr.bf16.mxu0 0
        %712 = vmatpush1.bf16.msra.mxu0 0
        %713 = vmatprep.subr.bf16.mxu0 0
        %714 = vmatpush1.bf16.msra.mxu0 0
        %715 = vmatprep.subr.bf16.mxu0 0
        %716 = vmatpush1.bf16.msra.mxu0 0
        %717 = vmatprep.subr.bf16.mxu0 0
        %718 = vmatpush1.bf16.msra.mxu0 0
        %719 = vmatprep.subr.bf16.mxu0 0
        %720 = vmatpush1.bf16.msra.mxu0 0
        %721 = vmatprep.subr.bf16.mxu0 0
        %722 = vmatpush1.bf16.msra.mxu0 0
        %723 = vmatprep.subr.bf16.mxu0 0
        %724 = vmatpush1.bf16.msra.mxu0 0
        %725 = vmatprep.subr.bf16.mxu0 0
        %726 = vmatpush1.bf16.msra.mxu0 0
        %727 = vmatprep.subr.bf16.mxu0 0
        %728 = vmatpush1.bf16.msra.mxu0 0
        %729 = vmatprep.subr.bf16.mxu0 0
        %730 = vmatpush1.bf16.msra.mxu0 0
        %731 = vmatprep.subr.bf16.mxu0 0
        %732 = vmatpush1.bf16.msra.mxu0 0
        %733 = vmatprep.subr.bf16.mxu0 0
        %734 = vmatpush1.bf16.msra.mxu0 0
        %735 = vmatprep.subr.bf16.mxu0 0
        %736 = vmatpush1.bf16.msra.mxu0 0
        %737 = vmatprep.mubr.bf16.mxu0 0
        %738 = vmatmul.mubr.bf16.gmra.mrb[0].mxu0 %v703
        %v739 = vpop.f32.mrb[0].mxu0
        %v740 = vadd.f32 %v700, %v739
        %v741 = vpop.f32.mrb[0].mxu0
        %v742 = vadd.f32 %v700, %v741
        %v743 = vpop.f32.mrb[0].mxu0
        %v744 = vpop.f32.mrb[0].mxu0
        %745 = vdwg.mxu0
        %v746 = vsub.f32 0.0, %v740
        %v747 = vsub.f32 0.0, %v742
        %v748 = vmul.f32 %v746, 1.442695
        %v749 = vpow.pop %v748
        %v750 = vmul.f32 %v747, 1.442695
        %v751 = vpow.pop %v750
        %v752 = vadd.f32 %v749, 1.0
        %v753 = vadd.f32 %v751, 1.0
        %v754 = vrcp.pop %v752
        %v755 = vrcp.pop %v753
        %v756 = vmul.f32 %v740, %v754
        %v757 = vmul.f32 %v742, %v755
        %758 = vrot.lane.b32.xlu0 %v693, 17
        %v759 = vpop.permute.xlu0 %758
        %760 = vrot.lane.b32.xlu0 %v694, 17
        %v761 = vpop.permute.xlu0 %760
        %v762 = vlaneseq
        %v763 = vand.u32 %v762, 127
        %vm764 = vcmp.lt.s32.totalorder %v763, 17
        %v765 = vsel %vm764, %v759, %v761
        %v766 = vsel %vm764, %v761, %v759
        %v768 = vlaneseq
        %v769 = vshrl.u32 %v768, 7
        %v770 = vsub.s32 0, %v769
        %v771 = vrot.slane %v616, %v770
        %v772 = vlaneseq
        %v773 = vshrl.u32 %v772, 7
        %v774 = vsub.s32 1, %v773
        %v775 = vrot.slane %v616, %v774
        %v778 = vmul.f32 %v766, %v771
        %v779 = vmul.f32 %v765, %v775
        %780 = vrot.lane.b32.xlu0 %v693, 16
        %v781 = vpop.permute.xlu0 %780
        %782 = vrot.lane.b32.xlu0 %v694, 16
        %v783 = vpop.permute.xlu0 %782
        %vm784 = vcmp.lt.s32.totalorder %v763, 16
        %v785 = vsel %vm784, %v781, %v783
        %v786 = vsel %vm784, %v783, %v781
        %v788 = vlaneseq
        %v789 = vshrl.u32 %v788, 7
        %v790 = vsub.s32 0, %v789
        %v791 = vrot.slane %v617, %v790
        %v792 = vlaneseq
        %v793 = vshrl.u32 %v792, 7
        %v794 = vsub.s32 1, %v793
        %v795 = vrot.slane %v617, %v794
        %v798 = vmul.f32 %v786, %v791
        %v799 = vmul.f32 %v785, %v795
        %800 = vrot.lane.b32.xlu0 %v693, 15
        %v801 = vpop.permute.xlu0 %800
        %802 = vrot.lane.b32.xlu0 %v694, 15
        %v803 = vpop.permute.xlu0 %802
        %vm804 = vcmp.lt.s32.totalorder %v763, 15
        %v805 = vsel %vm804, %v801, %v803
        %v806 = vsel %vm804, %v803, %v801
        %v808 = vlaneseq
        %v809 = vshrl.u32 %v808, 7
        %v810 = vsub.s32 0, %v809
        %v811 = vrot.slane %v618, %v810
        %v812 = vlaneseq
        %v813 = vshrl.u32 %v812, 7
        %v814 = vsub.s32 1, %v813
        %v815 = vrot.slane %v618, %v814
        %v818 = vmul.f32 %v806, %v811
        %v819 = vmul.f32 %v805, %v815
        %820 = vrot.lane.b32.xlu0 %v693, 1
        %v821 = vpop.permute.xlu0 %820
        %822 = vrot.lane.b32.xlu0 %v694, 1
        %v823 = vpop.permute.xlu0 %822
        %vm824 = vcmp.lt.s32.totalorder %v763, 1
        %v825 = vsel %vm824, %v821, %v823
        %v826 = vsel %vm824, %v823, %v821
        %v828 = vlaneseq
        %v829 = vshrl.u32 %v828, 7
        %v830 = vsub.s32 0, %v829
        %v831 = vrot.slane %v619, %v830
        %v832 = vlaneseq
        %v833 = vshrl.u32 %v832, 7
        %v834 = vsub.s32 1, %v833
        %v835 = vrot.slane %v619, %v834
        %v838 = vmul.f32 %v826, %v831
        %v839 = vmul.f32 %v825, %v835
        %840 = vrot.lane.b32.xlu0 %v693, 127
        %v841 = vpop.permute.xlu0 %840
        %842 = vrot.lane.b32.xlu0 %v694, 127
        %v843 = vpop.permute.xlu0 %842
        %vm844 = vcmp.lt.s32.totalorder %v763, 127
        %v845 = vsel %vm844, %v841, %v843
        %v846 = vsel %vm844, %v843, %v841
        %v848 = vlaneseq
        %v849 = vshrl.u32 %v848, 7
        %v850 = vsub.s32 0, %v849
        %v851 = vrot.slane %v620, %v850
        %v852 = vlaneseq
        %v853 = vshrl.u32 %v852, 7
        %v854 = vsub.s32 1, %v853
        %v855 = vrot.slane %v620, %v854
        %v858 = vmul.f32 %v845, %v851
        %v859 = vmul.f32 %v846, %v855
        %860 = vrot.lane.b32.xlu0 %v693, 113
        %v861 = vpop.permute.xlu0 %860
        %862 = vrot.lane.b32.xlu0 %v694, 113
        %v863 = vpop.permute.xlu0 %862
        %vm864 = vcmp.lt.s32.totalorder %v763, 113
        %v865 = vsel %vm864, %v861, %v863
        %v866 = vsel %vm864, %v863, %v861
        %v868 = vlaneseq
        %v869 = vshrl.u32 %v868, 7
        %v870 = vsub.s32 0, %v869
        %v871 = vrot.slane %v621, %v870
        %v872 = vlaneseq
        %v873 = vshrl.u32 %v872, 7
        %v874 = vsub.s32 1, %v873
        %v875 = vrot.slane %v621, %v874
        %v878 = vmul.f32 %v865, %v871
        %v879 = vmul.f32 %v866, %v875
        %880 = vrot.lane.b32.xlu0 %v693, 112
        %v881 = vpop.permute.xlu0 %880
        %882 = vrot.lane.b32.xlu0 %v694, 112
        %v883 = vpop.permute.xlu0 %882
        %vm884 = vcmp.lt.s32.totalorder %v763, 112
        %v885 = vsel %vm884, %v881, %v883
        %v886 = vsel %vm884, %v883, %v881
        %v888 = vlaneseq
        %v889 = vshrl.u32 %v888, 7
        %v890 = vsub.s32 0, %v889
        %v891 = vrot.slane %v622, %v890
        %v892 = vlaneseq
        %v893 = vshrl.u32 %v892, 7
        %v894 = vsub.s32 1, %v893
        %v895 = vrot.slane %v622, %v894
        %v898 = vmul.f32 %v885, %v891
        %v899 = vmul.f32 %v886, %v895
        %900 = vrot.lane.b32.xlu0 %v693, 111
        %v901 = vpop.permute.xlu0 %900
        %902 = vrot.lane.b32.xlu0 %v694, 111
        %v903 = vpop.permute.xlu0 %902
        %vm904 = vcmp.lt.s32.totalorder %v763, 111
        %v905 = vsel %vm904, %v901, %v903
        %v906 = vsel %vm904, %v903, %v901
        %v908 = vlaneseq
        %v909 = vshrl.u32 %v908, 7
        %v910 = vsub.s32 0, %v909
        %v911 = vrot.slane %v623, %v910
        %v912 = vlaneseq
        %v913 = vshrl.u32 %v912, 7
        %v914 = vsub.s32 1, %v913
        %v915 = vrot.slane %v623, %v914
        %v918 = vmul.f32 %v905, %v911
        %v919 = vmul.f32 %v906, %v915
        %v922 = vrot.slane %v798, 6
        %v923 = vrot.slane %v799, 6
        %v928 = vrot.slane %v818, 4
        %v929 = vrot.slane %v819, 4
        %v934 = vrot.slane %v838, 2
        %v935 = vrot.slane %v839, 2
        %v940 = vrot.slane %v858, 6
        %v941 = vrot.slane %v859, 6
        %v946 = vrot.slane %v878, 4
        %v947 = vrot.slane %v879, 4
        %v952 = vrot.slane %v898, 2
        %v953 = vrot.slane %v899, 2
        %v956 = vsel %vm635, %v778, %v922
        %v957 = vsel %vm635, %v779, %v923
        %vm958 = vcmask 1043456
        %v959 = vsel %vm958, %v956, %v928
        %v960 = vsel %vm958, %v957, %v929
        %vm961 = vcmask 1045504
        %v962 = vsel %vm961, %v959, %v934
        %v963 = vsel %vm961, %v960, %v935
        %v964 = vsel %vm635, %v693, %v940
        %v965 = vsel %vm635, %v694, %v941
        %v966 = vsel %vm958, %v964, %v946
        %v967 = vsel %vm958, %v965, %v947
        %v968 = vsel %vm961, %v966, %v952
        %v969 = vsel %vm961, %v967, %v953
        %v970 = vpack.c.bf16 %v968, %v962
        %v971 = vpack.c.bf16 %v969, %v963
        %v972 = vpack.c.bf16 %v918, %v918
        %v973 = vpack.c.bf16 %v919, %v919
        %v974 = vld [vmem:[#allocation13] sm:$0x1]
        %v975 = vld [vmem:[#allocation14] sm:$0x3]
        %977 = vset.pattern.permute.xlu0 0
        %978 = vperm.xlu0 %977, %v975
        %v979 = vpop.permute.xlu0 %978
        %vm981 = vcmask 146432
        %v983 = vsel %vm981, %v974, 0
        %vm985 = vcmask 1040384
        %v987 = vsel %vm985, %v972, 0
        %v990 = vsel %vm985, %v973, 0
        %992 = vmatprep.subr.bf16.mxu0 %v971
        %993 = vmatpush1.bf16.msra.mxu0 %v970
        %994 = vmatprep.subr.bf16.mxu0 %v990
        %995 = vmatpush1.bf16.msra.mxu0 %v987
        %996 = vmatprep.subr.bf16.mxu0 0
        %997 = vmatpush1.bf16.msra.mxu0 0
        %998 = vmatprep.subr.bf16.mxu0 0
        %999 = vmatpush1.bf16.msra.mxu0 0
        %1000 = vmatprep.subr.bf16.mxu0 0
        %1001 = vmatpush1.bf16.msra.mxu0 0
        %1002 = vmatprep.subr.bf16.mxu0 0
        %1003 = vmatpush1.bf16.msra.mxu0 0
        %1004 = vmatprep.subr.bf16.mxu0 0
        %1005 = vmatpush1.bf16.msra.mxu0 0
        %1006 = vmatprep.subr.bf16.mxu0 0
        %1007 = vmatpush1.bf16.msra.mxu0 0
        %1008 = vmatprep.subr.bf16.mxu0 0
        %1009 = vmatpush1.bf16.msra.mxu0 0
        %1010 = vmatprep.subr.bf16.mxu0 0
        %1011 = vmatpush1.bf16.msra.mxu0 0
        %1012 = vmatprep.subr.bf16.mxu0 0
        %1013 = vmatpush1.bf16.msra.mxu0 0
        %1014 = vmatprep.subr.bf16.mxu0 0
        %1015 = vmatpush1.bf16.msra.mxu0 0
        %1016 = vmatprep.subr.bf16.mxu0 0
        %1017 = vmatpush1.bf16.msra.mxu0 0
        %1018 = vmatprep.subr.bf16.mxu0 0
        %1019 = vmatpush1.bf16.msra.mxu0 0
        %1020 = vmatprep.subr.bf16.mxu0 0
        %1021 = vmatpush1.bf16.msra.mxu0 0
        %1022 = vmatprep.subr.bf16.mxu0 0
        %1023 = vmatpush1.bf16.msra.mxu0 0
        %1024 = vmatprep.mubr.bf16.mxu0 0
        %1025 = vmatmul.mubr.bf16.gmra.mrb[0].mxu0 %v983
        %v1026 = vpop.f32.mrb[0].mxu0
        %v1027 = vadd.f32 %v979, %v1026
        %v1028 = vpop.f32.mrb[0].mxu0
        %v1029 = vadd.f32 %v979, %v1028
        %v1030 = vpop.f32.mrb[0].mxu0
        %v1031 = vpop.f32.mrb[0].mxu0
        %1032 = vdwg.mxu0
        %v1033 = vsub.f32 0.0, %v1027
        %v1034 = vsub.f32 0.0, %v1029
        %v1035 = vmul.f32 %v1033, 1.442695
        %v1036 = vpow.pop %v1035
        %v1037 = vmul.f32 %v1034, 1.442695
        %v1038 = vpow.pop %v1037
        %v1039 = vadd.f32 %v1036, 1.0
        %v1040 = vadd.f32 %v1038, 1.0
        %v1041 = vrcp.pop %v1039
        %v1042 = vrcp.pop %v1040
        %v1043 = vmul.f32 %v1027, %v1041
        %v1044 = vmul.f32 %v1029, %v1042
        %1045 = vrot.lane.b32.xlu0 %v1043, 17
        %v1046 = vpop.permute.xlu0 %1045
        %1047 = vrot.lane.b32.xlu0 %v1044, 17
        %v1048 = vpop.permute.xlu0 %1047
        %v1049 = vsel %vm764, %v1046, %v1048
        %v1050 = vsel %vm764, %v1048, %v1046
        %v1051 = vmul.f32 %v1050, %v771
        %v1052 = vmul.f32 %v1049, %v775
        %1053 = vrot.lane.b32.xlu0 %v1043, 16
        %v1054 = vpop.permute.xlu0 %1053
        %1055 = vrot.lane.b32.xlu0 %v1044, 16
        %v1056 = vpop.permute.xlu0 %1055
        %v1057 = vsel %vm784, %v1054, %v1056
        %v1058 = vsel %vm784, %v1056, %v1054
        %v1059 = vmul.f32 %v1058, %v791
        %v1060 = vmul.f32 %v1057, %v795
        %1061 = vrot.lane.b32.xlu0 %v1043, 15
        %v1062 = vpop.permute.xlu0 %1061
        %1063 = vrot.lane.b32.xlu0 %v1044, 15
        %v1064 = vpop.permute.xlu0 %1063
        %v1065 = vsel %vm804, %v1062, %v1064
        %v1066 = vsel %vm804, %v1064, %v1062
        %v1067 = vmul.f32 %v1066, %v811
        %v1068 = vmul.f32 %v1065, %v815
        %1069 = vrot.lane.b32.xlu0 %v1043, 1
        %v1070 = vpop.permute.xlu0 %1069
        %1071 = vrot.lane.b32.xlu0 %v1044, 1
        %v1072 = vpop.permute.xlu0 %1071
        %v1073 = vsel %vm824, %v1070, %v1072
        %v1074 = vsel %vm824, %v1072, %v1070
        %v1075 = vmul.f32 %v1074, %v831
        %v1076 = vmul.f32 %v1073, %v835
        %1077 = vrot.lane.b32.xlu0 %v1043, 127
        %v1078 = vpop.permute.xlu0 %1077
        %1079 = vrot.lane.b32.xlu0 %v1044, 127
        %v1080 = vpop.permute.xlu0 %1079
        %v1081 = vsel %vm844, %v1078, %v1080
        %v1082 = vsel %vm844, %v1080, %v1078
        %v1083 = vmul.f32 %v1081, %v851
        %v1084 = vmul.f32 %v1082, %v855
        %1085 = vrot.lane.b32.xlu0 %v1043, 113
        %v1086 = vpop.permute.xlu0 %1085
        %1087 = vrot.lane.b32.xlu0 %v1044, 113
        %v1088 = vpop.permute.xlu0 %1087
        %v1089 = vsel %vm864, %v1086, %v1088
        %v1090 = vsel %vm864, %v1088, %v1086
        %v1091 = vmul.f32 %v1089, %v871
        %v1092 = vmul.f32 %v1090, %v875
        %1093 = vrot.lane.b32.xlu0 %v1043, 112
        %v1094 = vpop.permute.xlu0 %1093
        %1095 = vrot.lane.b32.xlu0 %v1044, 112
        %v1096 = vpop.permute.xlu0 %1095
        %v1097 = vsel %vm884, %v1094, %v1096
        %v1098 = vsel %vm884, %v1096, %v1094
        %v1099 = vmul.f32 %v1097, %v891
        %v1100 = vmul.f32 %v1098, %v895
        %1101 = vrot.lane.b32.xlu0 %v1043, 111
        %v1102 = vpop.permute.xlu0 %1101
        %1103 = vrot.lane.b32.xlu0 %v1044, 111
        %v1104 = vpop.permute.xlu0 %1103
        %v1105 = vsel %vm904, %v1102, %v1104
        %v1106 = vsel %vm904, %v1104, %v1102
        %v1107 = vmul.f32 %v1105, %v911
        %v1108 = vmul.f32 %v1106, %v915
        %v1111 = vrot.slane %v1059, 6
        %v1112 = vrot.slane %v1060, 6
        %v1117 = vrot.slane %v1067, 4
        %v1118 = vrot.slane %v1068, 4
        %v1123 = vrot.slane %v1075, 2
        %v1124 = vrot.slane %v1076, 2
        %v1129 = vrot.slane %v1083, 6
        %v1130 = vrot.slane %v1084, 6
        %v1135 = vrot.slane %v1091, 4
        %v1136 = vrot.slane %v1092, 4
        %v1141 = vrot.slane %v1099, 2
        %v1142 = vrot.slane %v1100, 2
        %v1145 = vsel %vm635, %v1051, %v1111
        %v1146 = vsel %vm635, %v1052, %v1112
        %v1147 = vsel %vm958, %v1145, %v1117
        %v1148 = vsel %vm958, %v1146, %v1118
        %v1149 = vsel %vm961, %v1147, %v1123
        %v1150 = vsel %vm961, %v1148, %v1124
        %v1151 = vsel %vm635, %v1043, %v1129
        %v1152 = vsel %vm635, %v1044, %v1130
        %v1153 = vsel %vm958, %v1151, %v1135
        %v1154 = vsel %vm958, %v1152, %v1136
        %v1155 = vsel %vm961, %v1153, %v1141
        %v1156 = vsel %vm961, %v1154, %v1142
        %v1157 = vpack.c.bf16 %v1155, %v1149
        %v1158 = vpack.c.bf16 %v1156, %v1150
        %v1159 = vpack.c.bf16 %v1107, %v1107
        %v1160 = vpack.c.bf16 %v1108, %v1108
        %v1161 = vld [vmem:[#allocation16] sm:$0x1]
        %v1162 = vld [vmem:[#allocation17] sm:$0x3]
        %1164 = vset.pattern.permute.xlu0 0
        %1165 = vperm.xlu0 %1164, %v1162
        %v1166 = vpop.permute.xlu0 %1165
        %v1169 = vsel %vm981, %v1161, 0
        %v1172 = vsel %vm985, %v1159, 0
        %v1175 = vsel %vm985, %v1160, 0
        %1177 = vmatprep.subr.bf16.mxu0 %v1158
        %1178 = vmatpush1.bf16.msra.mxu0 %v1157
        %1179 = vmatprep.subr.bf16.mxu0 %v1175
        %1180 = vmatpush1.bf16.msra.mxu0 %v1172
        %1181 = vmatprep.subr.bf16.mxu0 0
        %1182 = vmatpush1.bf16.msra.mxu0 0
        %1183 = vmatprep.subr.bf16.mxu0 0
        %1184 = vmatpush1.bf16.msra.mxu0 0
        %1185 = vmatprep.subr.bf16.mxu0 0
        %1186 = vmatpush1.bf16.msra.mxu0 0
        %1187 = vmatprep.subr.bf16.mxu0 0
        %1188 = vmatpush1.bf16.msra.mxu0 0
        %1189 = vmatprep.subr.bf16.mxu0 0
        %1190 = vmatpush1.bf16.msra.mxu0 0
        %1191 = vmatprep.subr.bf16.mxu0 0
        %1192 = vmatpush1.bf16.msra.mxu0 0
        %1193 = vmatprep.subr.bf16.mxu0 0
        %1194 = vmatpush1.bf16.msra.mxu0 0
        %1195 = vmatprep.subr.bf16.mxu0 0
        %1196 = vmatpush1.bf16.msra.mxu0 0
        %1197 = vmatprep.subr.bf16.mxu0 0
        %1198 = vmatpush1.bf16.msra.mxu0 0
        %1199 = vmatprep.subr.bf16.mxu0 0
        %1200 = vmatpush1.bf16.msra.mxu0 0
        %1201 = vmatprep.subr.bf16.mxu0 0
        %1202 = vmatpush1.bf16.msra.mxu0 0
        %1203 = vmatprep.subr.bf16.mxu0 0
        %1204 = vmatpush1.bf16.msra.mxu0 0
        %1205 = vmatprep.subr.bf16.mxu0 0
        %1206 = vmatpush1.bf16.msra.mxu0 0
        %1207 = vmatprep.subr.bf16.mxu0 0
        %1208 = vmatpush1.bf16.msra.mxu0 0
        %1209 = vmatprep.mubr.bf16.mxu0 0
        %1210 = vmatmul.mubr.bf16.gmra.mrb[0].mxu0 %v1169
        %v1211 = vpop.f32.mrb[0].mxu0
        %v1212 = vadd.f32 %v1166, %v1211
        %v1213 = vpop.f32.mrb[0].mxu0
        %v1214 = vadd.f32 %v1166, %v1213
        %v1215 = vpop.f32.mrb[0].mxu0
        %v1216 = vpop.f32.mrb[0].mxu0
        %1217 = vdwg.mxu0
        %v1218 = vsub.f32 0.0, %v1212
        %v1219 = vsub.f32 0.0, %v1214
        %v1220 = vmul.f32 %v1218, 1.442695
        %v1221 = vpow.pop %v1220
        %v1222 = vmul.f32 %v1219, 1.442695
        %v1223 = vpow.pop %v1222
        %v1224 = vadd.f32 %v1221, 1.0
        %v1225 = vadd.f32 %v1223, 1.0
        %v1226 = vrcp.pop %v1224
        %v1227 = vrcp.pop %v1225
        %v1228 = vmul.f32 %v1212, %v1226
        %v1229 = vmul.f32 %v1214, %v1227
        %v1230 = vadd.f32 %v693, %v1228
        %v1231 = vadd.f32 %v694, %v1229
        %v1232 = vld [vmem:[#allocation19] sm:$0x3]
        %v1233 = vpack.c.bf16 %v1230, %v1230
        %v1234 = vpack.c.bf16 %v1231, %v1231
        %v1235 = vld [vmem:[#allocation20] sm:$0x3]
        %v1236 = vpack.c.bf16 %v756, %v756
        %v1237 = vpack.c.bf16 %v757, %v757
        %vm1238 = vcmask 15360
        %v1240 = vsel %vm1238, %v1235, 0
        %v1243 = vsel %vm985, %v1236, 0
        %v1246 = vsel %vm985, %v1237, 0
        %1248 = vmatprep.subr.bf16.mxu0 %v1246
        %1249 = vmatpush1.bf16.msra.mxu0 %v1243
        %1250 = vmatprep.subr.bf16.mxu0 0
        %1251 = vmatpush1.bf16.msra.mxu0 0
        %1252 = vmatprep.subr.bf16.mxu0 0
        %1253 = vmatpush1.bf16.msra.mxu0 0
        %1254 = vmatprep.subr.bf16.mxu0 0
        %1255 = vmatpush1.bf16.msra.mxu0 0
        %1256 = vmatprep.subr.bf16.mxu0 0
        %1257 = vmatpush1.bf16.msra.mxu0 0
        %1258 = vmatprep.subr.bf16.mxu0 0
        %1259 = vmatpush1.bf16.msra.mxu0 0
        %1260 = vmatprep.subr.bf16.mxu0 0
        %1261 = vmatpush1.bf16.msra.mxu0 0
        %1262 = vmatprep.subr.bf16.mxu0 0
        %1263 = vmatpush1.bf16.msra.mxu0 0
        %1264 = vmatprep.subr.bf16.mxu0 0
        %1265 = vmatpush1.bf16.msra.mxu0 0
        %1266 = vmatprep.subr.bf16.mxu0 0
        %1267 = vmatpush1.bf16.msra.mxu0 0
        %1268 = vmatprep.subr.bf16.mxu0 0
        %1269 = vmatpush1.bf16.msra.mxu0 0
        %1270 = vmatprep.subr.bf16.mxu0 0
        %1271 = vmatpush1.bf16.msra.mxu0 0
        %1272 = vmatprep.subr.bf16.mxu0 0
        %1273 = vmatpush1.bf16.msra.mxu0 0
        %1274 = vmatprep.subr.bf16.mxu0 0
        %1275 = vmatpush1.bf16.msra.mxu0 0
        %1276 = vmatprep.subr.bf16.mxu0 0
        %1277 = vmatpush1.bf16.msra.mxu0 0
        %1278 = vmatprep.subr.bf16.mxu0 0
        %1279 = vmatpush1.bf16.msra.mxu0 0
        %1280 = vmatprep.mubr.bf16.mxu0 0
        %1281 = vmatmul.mubr.bf16.gmra.mrb[0].mxu0 %v1240
        %v1282 = vpop.f32.mrb[0].mxu0
        %v1283 = vadd.f32 0.0, %v1282
        %v1284 = vpop.f32.mrb[0].mxu0
        %v1285 = vadd.f32 0.0, %v1284
        %v1286 = vpop.f32.mrb[0].mxu0
        %v1287 = vpop.f32.mrb[0].mxu0
        %1288 = vdwg.mxu0
        %v1290 = vsel %vm1238, %v1232, 0
        %v1293 = vsel %vm985, %v1233, 0
        %v1296 = vsel %vm985, %v1234, 0
        %1298 = vmatprep.subr.bf16.mxu0 %v1296
        %1299 = vmatpush1.bf16.msra.mxu0 %v1293
        %1300 = vmatprep.subr.bf16.mxu0 0
        %1301 = vmatpush1.bf16.msra.mxu0 0
        %1302 = vmatprep.subr.bf16.mxu0 0
        %1303 = vmatpush1.bf16.msra.mxu0 0
        %1304 = vmatprep.subr.bf16.mxu0 0
        %1305 = vmatpush1.bf16.msra.mxu0 0
        %1306 = vmatprep.subr.bf16.mxu0 0
        %1307 = vmatpush1.bf16.msra.mxu0 0
        %1308 = vmatprep.subr.bf16.mxu0 0
        %1309 = vmatpush1.bf16.msra.mxu0 0
        %1310 = vmatprep.subr.bf16.mxu0 0
        %1311 = vmatpush1.bf16.msra.mxu0 0
        %1312 = vmatprep.subr.bf16.mxu0 0
        %1313 = vmatpush1.bf16.msra.mxu0 0
        %1314 = vmatprep.subr.bf16.mxu0 0
        %1315 = vmatpush1.bf16.msra.mxu0 0
        %1316 = vmatprep.subr.bf16.mxu0 0
        %1317 = vmatpush1.bf16.msra.mxu0 0
        %1318 = vmatprep.subr.bf16.mxu0 0
        %1319 = vmatpush1.bf16.msra.mxu0 0
        %1320 = vmatprep.subr.bf16.mxu0 0
        %1321 = vmatpush1.bf16.msra.mxu0 0
        %1322 = vmatprep.subr.bf16.mxu0 0
        %1323 = vmatpush1.bf16.msra.mxu0 0
        %1324 = vmatprep.subr.bf16.mxu0 0
        %1325 = vmatpush1.bf16.msra.mxu0 0
        %1326 = vmatprep.subr.bf16.mxu0 0
        %1327 = vmatpush1.bf16.msra.mxu0 0
        %1328 = vmatprep.subr.bf16.mxu0 0
        %1329 = vmatpush1.bf16.msra.mxu0 0
        %1330 = vmatprep.mubr.bf16.mxu0 0
        %1331 = vmatmul.mubr.bf16.gmra.mrb[0].mxu0 %v1290
        %v1332 = vpop.f32.mrb[0].mxu0
        %v1333 = vadd.f32 %v1283, %v1332
        %v1334 = vpop.f32.mrb[0].mxu0
        %v1335 = vadd.f32 %v1285, %v1334
        %v1336 = vpop.f32.mrb[0].mxu0
        %v1337 = vpop.f32.mrb[0].mxu0
        %1338 = vdwg.mxu0
        %v1339 = vld [vmem:[#allocation22] sm:$0xf]
        %1341 = vset.pattern.permute.xlu0 0
        %1342 = vperm.xlu0 %1341, %v1339
        %v1343 = vpop.permute.xlu0 %1342
        %v1345 = vadd.f32 %v1333, %v1343
        %v1346 = vadd.f32 %v1335, %v1343
        %v1347 = vsub.f32 0.0, %v1345
        %v1348 = vsub.f32 0.0, %v1346
        %v1349 = vmul.f32 %v1347, 1.442695
        %v1350 = vpow.pop %v1349
        %v1351 = vmul.f32 %v1348, 1.442695
        %v1352 = vpow.pop %v1351
        %v1353 = vadd.f32 %v1350, 1.0
        %v1354 = vadd.f32 %v1352, 1.0
        %v1355 = vrcp.pop %v1353
        %v1356 = vrcp.pop %v1354
        %v1357 = vmul.f32 %v1345, %v1355
        %v1358 = vmul.f32 %v1346, %v1356
        %v1361 = vcombine.low %v1357, %v1358
        %1363 = vst [vmem:[%s608] sm:$0xff] %v1361
        %s1364 = sand.u32 %s322, 1
        %s1365 = scalar_lea.sflag [#allocation4], %s1364
        %s1366 = sand.u32 %s322, 1
        %s1367 = smul.addr %s1366, 8
        %s1368 = scalar_lea.vmem [#allocation23], %s1367
        // Predicated region
        $region125: #{c2_forward.1} parent=71 // pred_check
          %p1369 = pneg %p332
        $region126: #{c2_forward.1} parent=71 // pred_check_branch
          %1371 = sbr.rel (%p1369) target = $region128
        $region127: #{c2_forward.1} parent=71 // pred_region
          %s1373 = ssub.s32 128, 128
          %1374 = vsyncadd %s1365, %s1373
          %s1375 = smul.addr %s36, 2
          %s1376 = smul.addr %s1375, 64
          %s1377 = scalar_lea.hbm %s13, %s1376
          %s1379 = sshll.u32 %s1368, 4
          %s1380 = int_to_ptr.vmem [resolvable:$true] %s1379
          %1382 = dma.vmem_to_hbm [thread:$0]  %s1380, 128, %s1377, %s1365
        $region128: #{c2_forward.1} parent=71 // pred_fallthru
          _
      $region72: #{c2_forward.1} parent=5 // pred_fallthru
        _
      %p1383 = scmp.le.s32.totalorder 2, %s31
      // Predicated region
      $region129: #{c2_forward.1} parent=5 // pred_check
        %p1384 = pneg %p1383
      $region130: #{c2_forward.1} parent=5 // pred_check_branch
        %1386 = sbr.rel (%p1384) target = $region132
      $region131: #{c2_forward.1} parent=5 // pred_region
        %s1387 = ssub.s32 %s31, 2
        // Predicated region
        $region133: #{c2_forward.1} parent=131 // pred_check
          %p1388 = pneg %p338
        $region134: #{c2_forward.1} parent=131 // pred_check_branch
          %1390 = sbr.rel (%p1388) target = $region136
        $region135: #{c2_forward.1} parent=131 // pred_region
          %s1391 = sand.u32 %s323, 1
          %s1392 = scalar_lea.sflag [#allocation4], %s1391
          %s1393 = sand.u32 %s323, 1
          %s1394 = smul.addr %s1393, 8
          %s1395 = scalar_lea.vmem [#allocation23], %s1394
          %1396 = dma.done %s1392, 128
        $region136: #{c2_forward.1} parent=131 // pred_fallthru
          _
      $region132: #{c2_forward.1} parent=5 // pred_fallthru
        _
    $region6: #{c2_forward.1} parent=1 // loop_footer
      %s35 = sadd.s32 1, %s31
    $region7: #{c2_forward.1} parent=1 // loop_footer_branch
      %30 = sbr.rel target = $region3
    $region8: #{c2_forward.1} parent=1 // loop_exit
      _
    %1397 = vsyncpa [#allocation3], 1
    %s1398 = scalar_lea.sflag [#allocation3], 1
    %1399 = vsyncpa %s1398, 1
    %1400 = vsyncpa [#allocation6], 1
    %1401 = vsyncpa [#allocation9], 1
    %1402 = vsyncpa [#allocation12], 1
    %1403 = vsyncpa [#allocation15], 1
    %1404 = vsyncpa [#allocation18], 1
    %1405 = vsyncpa [#allocation21], 1
    %1406 = vsyncpa [#allocation4], 1
    %s1407 = scalar_lea.sflag [#allocation4], 1
    %1408 = vsyncpa %s1407, 1

</llo_original>
